<compile_context>
chip_gen: v5e
topology: v5e:2x2
jax: 0.10.0
libtpu: 0.0.40
codegen_flags: <defaults>
</compile_context>

<pallas_src>
import functools

import jax
import jax.numpy as jnp
from jax.experimental import pallas as pl
from jax.experimental.pallas import tpu as pltpu

LEAKY_SLOPE = 0.01  # nn.LeakyReLU default
DILATION = 2        # fixed in the PyTorch module


def _leaky(x):
    return jnp.where(x > 0, x, LEAKY_SLOPE * x)


def _round_up(v, m):
    return (v + m - 1) // m * m


# ----------------------------------------------------------------------------
# Fused forward kernel: one batch element per grid step, everything in VMEM.
# ----------------------------------------------------------------------------
def fused_classic_conv1d_kernel(
    x_ref, w1_ref, b1_ref, w2_ref, b2_ref, l1w_ref, l1b_ref, l2w_ref, l2b_ref,
    o_ref,
    xpad_ref, h1pad_ref,
    *, L, ks1, pad1, lh1, ks2, pad2, lh2,
):
    f32 = jnp.float32

    # ---------------- conv1 (dilated) + LeakyReLU ----------------
    # Zero the halo scratch every step (scratch persists across grid steps and
    # may be per-core under "parallel" semantics, so don't rely on step 0).
    xpad_ref[...] = jnp.zeros_like(xpad_ref)
    # 8-aligned sublane store of the unpadded sequence into the halo buffer.
    xpad_ref[pl.ds(lh1, L), :] = x_ref[0]
    off1 = lh1 - pad1
    # NOTE: per-tap MXU matmuls (K = Cin) instead of an im2col wide-K matmul;
    # at these shapes the MXU has large slack and the tap loop avoids the
    # unaligned lane-slice writes an in-kernel im2col gather would require.
    acc1 = jnp.dot(xpad_ref[pl.ds(off1, L), :], w1_ref[0],
                   preferred_element_type=f32)
    for k in range(1, ks1):  # static unroll; ks1 is small
        acc1 += jnp.dot(xpad_ref[pl.ds(off1 + k * DILATION, L), :], w1_ref[k],
                        preferred_element_type=f32)
    h1 = _leaky(acc1 + b1_ref[...])

    # ---------------- conv2 (dilated) + LeakyReLU ----------------
    h1pad_ref[...] = jnp.zeros_like(h1pad_ref)
    h1pad_ref[pl.ds(lh2, L), :] = h1.astype(h1pad_ref.dtype)
    off2 = lh2 - pad2
    acc2 = jnp.dot(h1pad_ref[pl.ds(off2, L), :], w2_ref[0],
                   preferred_element_type=f32)
    for k in range(1, ks2):
        acc2 += jnp.dot(h1pad_ref[pl.ds(off2 + k * DILATION, L), :], w2_ref[k],
                        preferred_element_type=f32)
    h2 = _leaky(acc2 + b2_ref[...])

    # -------- MLP head: Linear -> LeakyReLU -> Linear -> Sigmoid --------
    h3 = _leaky(jnp.dot(h2, l1w_ref[...], preferred_element_type=f32)
                + l1b_ref[...])
    z = jnp.dot(h3, l2w_ref[...], preferred_element_type=f32) + l2b_ref[...]
    o_ref[0] = jax.nn.sigmoid(z).astype(o_ref.dtype)


# ----------------------------------------------------------------------------
# Wrapper: single pallas_call for the whole ClassicCONV1D forward.
# ----------------------------------------------------------------------------
def classic_conv1d_forward(x, params):
    """x: (B, L, input_dim) -> (B, L, output_dim)."""
    B, L, Cin = x.shape
    w1, b1 = params["conv1_w"], params["conv1_b"]
    w2, b2 = params["conv2_w"], params["conv2_b"]
    l1w, l1b = params["lin1_w"], params["lin1_b"]
    l2w, l2b = params["lin2_w"], params["lin2_b"]

    ks1, _, H1 = w1.shape
    ks2, _, H2 = w2.shape
    O = l2w.shape[1]

    pad1, pad2 = ks1 - 1, ks2 - 1          # module uses padding = ks - 1
    lh1 = _round_up(pad1, 8)               # 8-aligned left halo (sublane)
    lh2 = _round_up(pad2, 8)

    kern = functools.partial(
        fused_classic_conv1d_kernel,
        L=L, ks1=ks1, pad1=pad1, lh1=lh1, ks2=ks2, pad2=pad2, lh2=lh2,
    )

    # Advisory cost estimate for the XLA scheduler.
    flops = 2 * B * L * (ks1 * Cin * H1 + ks2 * H1 * H2 + H2 * H1 + H1 * O)
    bytes_accessed = 4 * (
        x.size + w1.size + b1.size + w2.size + b2.size
        + l1w.size + l1b.size + l2w.size + l2b.size + B * L * O
    )

    return pl.pallas_call(
        kern,
        out_shape=jax.ShapeDtypeStruct((B, L, O), x.dtype),
        grid=(B,),
        in_specs=[
            pl.BlockSpec((1, L, Cin), lambda i: (i, 0, 0)),      # x (per batch)
            pl.BlockSpec((ks1, Cin, H1), lambda i: (0, 0, 0)),   # conv1 W
            pl.BlockSpec((1, H1), lambda i: (0, 0)),             # conv1 b
            pl.BlockSpec((ks2, H1, H2), lambda i: (0, 0, 0)),    # conv2 W
            pl.BlockSpec((1, H2), lambda i: (0, 0)),             # conv2 b
            pl.BlockSpec((H2, H1), lambda i: (0, 0)),            # lin1 W
            pl.BlockSpec((1, H1), lambda i: (0, 0)),             # lin1 b
            pl.BlockSpec((H1, O), lambda i: (0, 0)),             # lin2 W
            pl.BlockSpec((1, O), lambda i: (0, 0)),              # lin2 b
        ],
        out_specs=pl.BlockSpec((1, L, O), lambda i: (i, 0, 0)),
        scratch_shapes=[
            pltpu.VMEM((lh1 + L + pad1, Cin), jnp.float32),  # conv1 halo buf
            pltpu.VMEM((lh2 + L + pad2, H1), jnp.float32),   # conv2 halo buf
        ],
        compiler_params=pltpu.CompilerParams(
            dimension_semantics=("parallel",)),
        cost_estimate=pl.CostEstimate(
            flops=flops, transcendentals=B * L * O,
            bytes_accessed=bytes_accessed),
    )(x, w1, b1.reshape(1, H1), w2, b2.reshape(1, H2),
      l1w, l1b.reshape(1, H1), l2w, l2b.reshape(1, O))


# ----------------------------------------------------------------------------
# Pure-JAX reference (same math, no Pallas) for the correctness check.
# ----------------------------------------------------------------------------
def _ref_conv(x, w, b, dilation, padding):
    L = x.shape[1]
    ks = w.shape[0]
    xp = jnp.pad(x, ((0, 0), (padding, padding), (0, 0)))
    acc = sum(
        jnp.einsum("blc,co->blo", xp[:, k * dilation: k * dilation + L, :], w[k])
        for k in range(ks)
    ) + b
    return _leaky(acc)


def ref_forward(x, p):
    h = _ref_conv(x, p["conv1_w"], p["conv1_b"], DILATION, p["conv1_w"].shape[0] - 1)
    h = _ref_conv(h, p["conv2_w"], p["conv2_b"], DILATION, p["conv2_w"].shape[0] - 1)
    h = _leaky(h @ p["lin1_w"] + p["lin1_b"])
    return jax.nn.sigmoid(h @ p["lin2_w"] + p["lin2_b"])


if __name__ == "__main__":
    # Module defaults: input_dim=38, hidden1=64, hidden2=128, ks1=3, ks2=12, out=8
    input_dim, hidden1, hidden2, ks1, ks2, output_dim = 38, 64, 128, 3, 12, 8
    B, L = 2, 16  # small batch / sequence length

    key = jax.random.PRNGKey(0)
    keys = jax.random.split(key, 9)
    params = {
        # conv weights stored as (ks, C_in, C_out)
        "conv1_w": 0.05 * jax.random.normal(keys[0], (ks1, input_dim, hidden1), jnp.float32),
        "conv1_b": 0.05 * jax.random.normal(keys[1], (hidden1,), jnp.float32),
        "conv2_w": 0.05 * jax.random.normal(keys[2], (ks2, hidden1, hidden2), jnp.float32),
        "conv2_b": 0.05 * jax.random.normal(keys[3], (hidden2,), jnp.float32),
        # linear weights stored as (C_in, C_out)
        "lin1_w": 0.05 * jax.random.normal(keys[4], (hidden2, hidden1), jnp.float32),
        "lin1_b": 0.05 * jax.random.normal(keys[5], (hidden1,), jnp.float32),
        "lin2_w": 0.05 * jax.random.normal(keys[6], (hidden1, output_dim), jnp.float32),
        "lin2_b": 0.05 * jax.random.normal(keys[7], (output_dim,), jnp.float32),
    }

    x = jax.random.normal(keys[8], (B, L, input_dim), jnp.float32)

    out = jax.block_until_ready(classic_conv1d_forward(x, params))
    assert out.shape == (B, L, output_dim), out.shape

    ref = jax.block_until_ready(ref_forward(x, params))
    assert jnp.allclose(out, ref, atol=1e-5, rtol=1e-5), float(
        jnp.max(jnp.abs(out - ref))
    )

    print("KERNEL_OK")
</pallas_src>

<mosaic_0001>
module attributes {stable_mosaic.version = 11 : i64} {
  func.func @fused_classic_conv1d_kernel(%arg0: i32, %arg1: memref<1x16x38xf32, #tpu.memory_space<vmem>>, %arg2: memref<3x38x64xf32, #tpu.memory_space<vmem>>, %arg3: memref<1x64xf32, #tpu.memory_space<vmem>>, %arg4: memref<12x64x128xf32, #tpu.memory_space<vmem>>, %arg5: memref<1x128xf32, #tpu.memory_space<vmem>>, %arg6: memref<128x64xf32, #tpu.memory_space<vmem>>, %arg7: memref<1x64xf32, #tpu.memory_space<vmem>>, %arg8: memref<64x8xf32, #tpu.memory_space<vmem>>, %arg9: memref<1x8xf32, #tpu.memory_space<vmem>>, %arg10: memref<1x16x8xf32, #tpu.memory_space<vmem>>, %arg11: memref<26x38xf32, #tpu.memory_space<vmem>>, %arg12: memref<43x64xf32, #tpu.memory_space<vmem>>) attributes {dimension_semantics = [#tpu.dimension_semantics<parallel>], iteration_bounds = array<i64: 2>, scalar_prefetch = 0 : i64, scratch_operands = 2 : i64, tpu.core_type = #tpu.core_type<tc>, window_params = [{transform_indices = @transform_0, window_bounds = array<i64: 1, 16, 38>}, {pipeline_mode = #tpu.pipeline_mode<synchronous>, transform_indices = @transform_1, window_bounds = array<i64: 3, 38, 64>}, {pipeline_mode = #tpu.pipeline_mode<synchronous>, transform_indices = @transform_2, window_bounds = array<i64: 1, 64>}, {pipeline_mode = #tpu.pipeline_mode<synchronous>, transform_indices = @transform_3, window_bounds = array<i64: 12, 64, 128>}, {pipeline_mode = #tpu.pipeline_mode<synchronous>, transform_indices = @transform_4, window_bounds = array<i64: 1, 128>}, {pipeline_mode = #tpu.pipeline_mode<synchronous>, transform_indices = @transform_5, window_bounds = array<i64: 128, 64>}, {pipeline_mode = #tpu.pipeline_mode<synchronous>, transform_indices = @transform_6, window_bounds = array<i64: 1, 64>}, {pipeline_mode = #tpu.pipeline_mode<synchronous>, transform_indices = @transform_7, window_bounds = array<i64: 64, 8>}, {pipeline_mode = #tpu.pipeline_mode<synchronous>, transform_indices = @transform_8, window_bounds = array<i64: 1, 8>}, {transform_indices = @transform_9, window_bounds = array<i64: 1, 16, 8>}]} {
    %cst = arith.constant 0.000000e+00 : f32
    %0 = vector.broadcast %cst : f32 to vector<26x38xf32>
    %c0 = arith.constant 0 : index
    %c0_0 = arith.constant 0 : index
    %1 = vector.load %arg11[%c0, %c0_0] : memref<26x38xf32, #tpu.memory_space<vmem>>, vector<26x38xf32>
    tpu.vector_store %arg11[%c0, %c0_0], %0 {strides = array<i32>} : memref<26x38xf32, #tpu.memory_space<vmem>>, vector<26x38xf32>,
    %c0_1 = arith.constant 0 : index
    %c0_2 = arith.constant 0 : index
    %c0_3 = arith.constant 0 : index
    %2 = vector.load %arg1[%c0_1, %c0_2, %c0_3] : memref<1x16x38xf32, #tpu.memory_space<vmem>>, vector<1x16x38xf32>
    %3 = vector.shape_cast %2 : vector<1x16x38xf32> to vector<16x38xf32>
    %c8 = arith.constant 8 : index
    %c0_4 = arith.constant 0 : index
    %4 = vector.load %arg11[%c8, %c0_4] : memref<26x38xf32, #tpu.memory_space<vmem>>, vector<16x38xf32>
    tpu.vector_store %arg11[%c8, %c0_4], %3 {strides = array<i32>} : memref<26x38xf32, #tpu.memory_space<vmem>>, vector<16x38xf32>,
    %c6 = arith.constant 6 : index
    %c0_5 = arith.constant 0 : index
    %5 = vector.load %arg11[%c6, %c0_5] : memref<26x38xf32, #tpu.memory_space<vmem>>, vector<16x38xf32>
    %c0_6 = arith.constant 0 : index
    %c0_7 = arith.constant 0 : index
    %c0_8 = arith.constant 0 : index
    %6 = vector.load %arg2[%c0_6, %c0_7, %c0_8] : memref<3x38x64xf32, #tpu.memory_space<vmem>>, vector<1x38x64xf32>
    %7 = vector.shape_cast %6 : vector<1x38x64xf32> to vector<38x64xf32>
    %cst_9 = arith.constant dense<0.000000e+00> : vector<16x64xf32>
    %8 = tpu.matmul %5, %7, %cst_9 {dimension_numbers = #tpu.dot_dimension_numbers<[1], [0], [0], [1], [0, 0, 1, 1], [], []>} : vector<16x38xf32>, vector<38x64xf32>, vector<16x64xf32> -> vector<16x64xf32>
    %c8_10 = arith.constant 8 : index
    %c0_11 = arith.constant 0 : index
    %9 = vector.load %arg11[%c8_10, %c0_11] : memref<26x38xf32, #tpu.memory_space<vmem>>, vector<16x38xf32>
    %c1 = arith.constant 1 : index
    %c0_12 = arith.constant 0 : index
    %c0_13 = arith.constant 0 : index
    %10 = vector.load %arg2[%c1, %c0_12, %c0_13] : memref<3x38x64xf32, #tpu.memory_space<vmem>>, vector<1x38x64xf32>
    %11 = vector.shape_cast %10 : vector<1x38x64xf32> to vector<38x64xf32>
    %cst_14 = arith.constant dense<0.000000e+00> : vector<16x64xf32>
    %12 = tpu.matmul %9, %11, %cst_14 {dimension_numbers = #tpu.dot_dimension_numbers<[1], [0], [0], [1], [0, 0, 1, 1], [], []>} : vector<16x38xf32>, vector<38x64xf32>, vector<16x64xf32> -> vector<16x64xf32>
    %13 = arith.addf %8, %12 : vector<16x64xf32>
    %c10 = arith.constant 10 : index
    %c0_15 = arith.constant 0 : index
    %14 = vector.load %arg11[%c10, %c0_15] : memref<26x38xf32, #tpu.memory_space<vmem>>, vector<16x38xf32>
    %c2 = arith.constant 2 : index
    %c0_16 = arith.constant 0 : index
    %c0_17 = arith.constant 0 : index
    %15 = vector.load %arg2[%c2, %c0_16, %c0_17] : memref<3x38x64xf32, #tpu.memory_space<vmem>>, vector<1x38x64xf32>
    %16 = vector.shape_cast %15 : vector<1x38x64xf32> to vector<38x64xf32>
    %cst_18 = arith.constant dense<0.000000e+00> : vector<16x64xf32>
    %17 = tpu.matmul %14, %16, %cst_18 {dimension_numbers = #tpu.dot_dimension_numbers<[1], [0], [0], [1], [0, 0, 1, 1], [], []>} : vector<16x38xf32>, vector<38x64xf32>, vector<16x64xf32> -> vector<16x64xf32>
    %18 = arith.addf %13, %17 : vector<16x64xf32>
    %c0_19 = arith.constant 0 : index
    %c0_20 = arith.constant 0 : index
    %19 = vector.load %arg3[%c0_19, %c0_20] : memref<1x64xf32, #tpu.memory_space<vmem>>, vector<1x64xf32>
    %20 = vector.broadcast %19 : vector<1x64xf32> to vector<16x64xf32>
    %21 = arith.addf %18, %20 : vector<16x64xf32>
    %cst_21 = arith.constant 0.000000e+00 : f32
    %22 = vector.broadcast %cst_21 : f32 to vector<16x64xf32>
    %23 = arith.cmpf ogt, %21, %22 : vector<16x64xf32>
    %cst_22 = arith.constant 0.00999999977 : f32
    %24 = vector.broadcast %cst_22 : f32 to vector<16x64xf32>
    %25 = arith.mulf %24, %21 : vector<16x64xf32>
    %26 = arith.select %23, %21, %25 : vector<16x64xi1>, vector<16x64xf32>
    %cst_23 = arith.constant 0.000000e+00 : f32
    %27 = vector.broadcast %cst_23 : f32 to vector<43x64xf32>
    %c0_24 = arith.constant 0 : index
    %c0_25 = arith.constant 0 : index
    %28 = vector.load %arg12[%c0_24, %c0_25] : memref<43x64xf32, #tpu.memory_space<vmem>>, vector<43x64xf32>
    tpu.vector_store %arg12[%c0_24, %c0_25], %27 {strides = array<i32>} : memref<43x64xf32, #tpu.memory_space<vmem>>, vector<43x64xf32>,
    %c16 = arith.constant 16 : index
    %c0_26 = arith.constant 0 : index
    %29 = vector.load %arg12[%c16, %c0_26] : memref<43x64xf32, #tpu.memory_space<vmem>>, vector<16x64xf32>
    tpu.vector_store %arg12[%c16, %c0_26], %26 {strides = array<i32>} : memref<43x64xf32, #tpu.memory_space<vmem>>, vector<16x64xf32>,
    %c5 = arith.constant 5 : index
    %c0_27 = arith.constant 0 : index
    %30 = vector.load %arg12[%c5, %c0_27] : memref<43x64xf32, #tpu.memory_space<vmem>>, vector<16x64xf32>
    %c0_28 = arith.constant 0 : index
    %c0_29 = arith.constant 0 : index
    %c0_30 = arith.constant 0 : index
    %31 = vector.load %arg4[%c0_28, %c0_29, %c0_30] : memref<12x64x128xf32, #tpu.memory_space<vmem>>, vector<1x64x128xf32>
    %32 = vector.shape_cast %31 : vector<1x64x128xf32> to vector<64x128xf32>
    %cst_31 = arith.constant dense<0.000000e+00> : vector<16x128xf32>
    %33 = tpu.matmul %30, %32, %cst_31 {dimension_numbers = #tpu.dot_dimension_numbers<[1], [0], [0], [1], [0, 0, 1, 1], [], []>} : vector<16x64xf32>, vector<64x128xf32>, vector<16x128xf32> -> vector<16x128xf32>
    %c7 = arith.constant 7 : index
    %c0_32 = arith.constant 0 : index
    %34 = vector.load %arg12[%c7, %c0_32] : memref<43x64xf32, #tpu.memory_space<vmem>>, vector<16x64xf32>
    %c1_33 = arith.constant 1 : index
    %c0_34 = arith.constant 0 : index
    %c0_35 = arith.constant 0 : index
    %35 = vector.load %arg4[%c1_33, %c0_34, %c0_35] : memref<12x64x128xf32, #tpu.memory_space<vmem>>, vector<1x64x128xf32>
    %36 = vector.shape_cast %35 : vector<1x64x128xf32> to vector<64x128xf32>
    %cst_36 = arith.constant dense<0.000000e+00> : vector<16x128xf32>
    %37 = tpu.matmul %34, %36, %cst_36 {dimension_numbers = #tpu.dot_dimension_numbers<[1], [0], [0], [1], [0, 0, 1, 1], [], []>} : vector<16x64xf32>, vector<64x128xf32>, vector<16x128xf32> -> vector<16x128xf32>
    %38 = arith.addf %33, %37 : vector<16x128xf32>
    %c9 = arith.constant 9 : index
    %c0_37 = arith.constant 0 : index
    %39 = vector.load %arg12[%c9, %c0_37] : memref<43x64xf32, #tpu.memory_space<vmem>>, vector<16x64xf32>
    %c2_38 = arith.constant 2 : index
    %c0_39 = arith.constant 0 : index
    %c0_40 = arith.constant 0 : index
    %40 = vector.load %arg4[%c2_38, %c0_39, %c0_40] : memref<12x64x128xf32, #tpu.memory_space<vmem>>, vector<1x64x128xf32>
    %41 = vector.shape_cast %40 : vector<1x64x128xf32> to vector<64x128xf32>
    %cst_41 = arith.constant dense<0.000000e+00> : vector<16x128xf32>
    %42 = tpu.matmul %39, %41, %cst_41 {dimension_numbers = #tpu.dot_dimension_numbers<[1], [0], [0], [1], [0, 0, 1, 1], [], []>} : vector<16x64xf32>, vector<64x128xf32>, vector<16x128xf32> -> vector<16x128xf32>
    %43 = arith.addf %38, %42 : vector<16x128xf32>
    %c11 = arith.constant 11 : index
    %c0_42 = arith.constant 0 : index
    %44 = vector.load %arg12[%c11, %c0_42] : memref<43x64xf32, #tpu.memory_space<vmem>>, vector<16x64xf32>
    %c3 = arith.constant 3 : index
    %c0_43 = arith.constant 0 : index
    %c0_44 = arith.constant 0 : index
    %45 = vector.load %arg4[%c3, %c0_43, %c0_44] : memref<12x64x128xf32, #tpu.memory_space<vmem>>, vector<1x64x128xf32>
    %46 = vector.shape_cast %45 : vector<1x64x128xf32> to vector<64x128xf32>
    %cst_45 = arith.constant dense<0.000000e+00> : vector<16x128xf32>
    %47 = tpu.matmul %44, %46, %cst_45 {dimension_numbers = #tpu.dot_dimension_numbers<[1], [0], [0], [1], [0, 0, 1, 1], [], []>} : vector<16x64xf32>, vector<64x128xf32>, vector<16x128xf32> -> vector<16x128xf32>
    %48 = arith.addf %43, %47 : vector<16x128xf32>
    %c13 = arith.constant 13 : index
    %c0_46 = arith.constant 0 : index
    %49 = vector.load %arg12[%c13, %c0_46] : memref<43x64xf32, #tpu.memory_space<vmem>>, vector<16x64xf32>
    %c4 = arith.constant 4 : index
    %c0_47 = arith.constant 0 : index
    %c0_48 = arith.constant 0 : index
    %50 = vector.load %arg4[%c4, %c0_47, %c0_48] : memref<12x64x128xf32, #tpu.memory_space<vmem>>, vector<1x64x128xf32>
    %51 = vector.shape_cast %50 : vector<1x64x128xf32> to vector<64x128xf32>
    %cst_49 = arith.constant dense<0.000000e+00> : vector<16x128xf32>
    %52 = tpu.matmul %49, %51, %cst_49 {dimension_numbers = #tpu.dot_dimension_numbers<[1], [0], [0], [1], [0, 0, 1, 1], [], []>} : vector<16x64xf32>, vector<64x128xf32>, vector<16x128xf32> -> vector<16x128xf32>
    %53 = arith.addf %48, %52 : vector<16x128xf32>
    %c15 = arith.constant 15 : index
    %c0_50 = arith.constant 0 : index
    %54 = vector.load %arg12[%c15, %c0_50] : memref<43x64xf32, #tpu.memory_space<vmem>>, vector<16x64xf32>
    %c5_51 = arith.constant 5 : index
    %c0_52 = arith.constant 0 : index
    %c0_53 = arith.constant 0 : index
    %55 = vector.load %arg4[%c5_51, %c0_52, %c0_53] : memref<12x64x128xf32, #tpu.memory_space<vmem>>, vector<1x64x128xf32>
    %56 = vector.shape_cast %55 : vector<1x64x128xf32> to vector<64x128xf32>
    %cst_54 = arith.constant dense<0.000000e+00> : vector<16x128xf32>
    %57 = tpu.matmul %54, %56, %cst_54 {dimension_numbers = #tpu.dot_dimension_numbers<[1], [0], [0], [1], [0, 0, 1, 1], [], []>} : vector<16x64xf32>, vector<64x128xf32>, vector<16x128xf32> -> vector<16x128xf32>
    %58 = arith.addf %53, %57 : vector<16x128xf32>
    %c17 = arith.constant 17 : index
    %c0_55 = arith.constant 0 : index
    %59 = vector.load %arg12[%c17, %c0_55] : memref<43x64xf32, #tpu.memory_space<vmem>>, vector<16x64xf32>
    %c6_56 = arith.constant 6 : index
    %c0_57 = arith.constant 0 : index
    %c0_58 = arith.constant 0 : index
    %60 = vector.load %arg4[%c6_56, %c0_57, %c0_58] : memref<12x64x128xf32, #tpu.memory_space<vmem>>, vector<1x64x128xf32>
    %61 = vector.shape_cast %60 : vector<1x64x128xf32> to vector<64x128xf32>
    %cst_59 = arith.constant dense<0.000000e+00> : vector<16x128xf32>
    %62 = tpu.matmul %59, %61, %cst_59 {dimension_numbers = #tpu.dot_dimension_numbers<[1], [0], [0], [1], [0, 0, 1, 1], [], []>} : vector<16x64xf32>, vector<64x128xf32>, vector<16x128xf32> -> vector<16x128xf32>
    %63 = arith.addf %58, %62 : vector<16x128xf32>
    %c19 = arith.constant 19 : index
    %c0_60 = arith.constant 0 : index
    %64 = vector.load %arg12[%c19, %c0_60] : memref<43x64xf32, #tpu.memory_space<vmem>>, vector<16x64xf32>
    %c7_61 = arith.constant 7 : index
    %c0_62 = arith.constant 0 : index
    %c0_63 = arith.constant 0 : index
    %65 = vector.load %arg4[%c7_61, %c0_62, %c0_63] : memref<12x64x128xf32, #tpu.memory_space<vmem>>, vector<1x64x128xf32>
    %66 = vector.shape_cast %65 : vector<1x64x128xf32> to vector<64x128xf32>
    %cst_64 = arith.constant dense<0.000000e+00> : vector<16x128xf32>
    %67 = tpu.matmul %64, %66, %cst_64 {dimension_numbers = #tpu.dot_dimension_numbers<[1], [0], [0], [1], [0, 0, 1, 1], [], []>} : vector<16x64xf32>, vector<64x128xf32>, vector<16x128xf32> -> vector<16x128xf32>
    %68 = arith.addf %63, %67 : vector<16x128xf32>
    %c21 = arith.constant 21 : index
    %c0_65 = arith.constant 0 : index
    %69 = vector.load %arg12[%c21, %c0_65] : memref<43x64xf32, #tpu.memory_space<vmem>>, vector<16x64xf32>
    %c8_66 = arith.constant 8 : index
    %c0_67 = arith.constant 0 : index
    %c0_68 = arith.constant 0 : index
    %70 = vector.load %arg4[%c8_66, %c0_67, %c0_68] : memref<12x64x128xf32, #tpu.memory_space<vmem>>, vector<1x64x128xf32>
    %71 = vector.shape_cast %70 : vector<1x64x128xf32> to vector<64x128xf32>
    %cst_69 = arith.constant dense<0.000000e+00> : vector<16x128xf32>
    %72 = tpu.matmul %69, %71, %cst_69 {dimension_numbers = #tpu.dot_dimension_numbers<[1], [0], [0], [1], [0, 0, 1, 1], [], []>} : vector<16x64xf32>, vector<64x128xf32>, vector<16x128xf32> -> vector<16x128xf32>
    %73 = arith.addf %68, %72 : vector<16x128xf32>
    %c23 = arith.constant 23 : index
    %c0_70 = arith.constant 0 : index
    %74 = vector.load %arg12[%c23, %c0_70] : memref<43x64xf32, #tpu.memory_space<vmem>>, vector<16x64xf32>
    %c9_71 = arith.constant 9 : index
    %c0_72 = arith.constant 0 : index
    %c0_73 = arith.constant 0 : index
    %75 = vector.load %arg4[%c9_71, %c0_72, %c0_73] : memref<12x64x128xf32, #tpu.memory_space<vmem>>, vector<1x64x128xf32>
    %76 = vector.shape_cast %75 : vector<1x64x128xf32> to vector<64x128xf32>
    %cst_74 = arith.constant dense<0.000000e+00> : vector<16x128xf32>
    %77 = tpu.matmul %74, %76, %cst_74 {dimension_numbers = #tpu.dot_dimension_numbers<[1], [0], [0], [1], [0, 0, 1, 1], [], []>} : vector<16x64xf32>, vector<64x128xf32>, vector<16x128xf32> -> vector<16x128xf32>
    %78 = arith.addf %73, %77 : vector<16x128xf32>
    %c25 = arith.constant 25 : index
    %c0_75 = arith.constant 0 : index
    %79 = vector.load %arg12[%c25, %c0_75] : memref<43x64xf32, #tpu.memory_space<vmem>>, vector<16x64xf32>
    %c10_76 = arith.constant 10 : index
    %c0_77 = arith.constant 0 : index
    %c0_78 = arith.constant 0 : index
    %80 = vector.load %arg4[%c10_76, %c0_77, %c0_78] : memref<12x64x128xf32, #tpu.memory_space<vmem>>, vector<1x64x128xf32>
    %81 = vector.shape_cast %80 : vector<1x64x128xf32> to vector<64x128xf32>
    %cst_79 = arith.constant dense<0.000000e+00> : vector<16x128xf32>
    %82 = tpu.matmul %79, %81, %cst_79 {dimension_numbers = #tpu.dot_dimension_numbers<[1], [0], [0], [1], [0, 0, 1, 1], [], []>} : vector<16x64xf32>, vector<64x128xf32>, vector<16x128xf32> -> vector<16x128xf32>
    %83 = arith.addf %78, %82 : vector<16x128xf32>
    %c27 = arith.constant 27 : index
    %c0_80 = arith.constant 0 : index
    %84 = vector.load %arg12[%c27, %c0_80] : memref<43x64xf32, #tpu.memory_space<vmem>>, vector<16x64xf32>
    %c11_81 = arith.constant 11 : index
    %c0_82 = arith.constant 0 : index
    %c0_83 = arith.constant 0 : index
    %85 = vector.load %arg4[%c11_81, %c0_82, %c0_83] : memref<12x64x128xf32, #tpu.memory_space<vmem>>, vector<1x64x128xf32>
    %86 = vector.shape_cast %85 : vector<1x64x128xf32> to vector<64x128xf32>
    %cst_84 = arith.constant dense<0.000000e+00> : vector<16x128xf32>
    %87 = tpu.matmul %84, %86, %cst_84 {dimension_numbers = #tpu.dot_dimension_numbers<[1], [0], [0], [1], [0, 0, 1, 1], [], []>} : vector<16x64xf32>, vector<64x128xf32>, vector<16x128xf32> -> vector<16x128xf32>
    %88 = arith.addf %83, %87 : vector<16x128xf32>
    %c0_85 = arith.constant 0 : index
    %c0_86 = arith.constant 0 : index
    %89 = vector.load %arg5[%c0_85, %c0_86] : memref<1x128xf32, #tpu.memory_space<vmem>>, vector<1x128xf32>
    %90 = vector.broadcast %89 : vector<1x128xf32> to vector<16x128xf32>
    %91 = arith.addf %88, %90 : vector<16x128xf32>
    %cst_87 = arith.constant 0.000000e+00 : f32
    %92 = vector.broadcast %cst_87 : f32 to vector<16x128xf32>
    %93 = arith.cmpf ogt, %91, %92 : vector<16x128xf32>
    %cst_88 = arith.constant 0.00999999977 : f32
    %94 = vector.broadcast %cst_88 : f32 to vector<16x128xf32>
    %95 = arith.mulf %94, %91 : vector<16x128xf32>
    %96 = arith.select %93, %91, %95 : vector<16x128xi1>, vector<16x128xf32>
    %c0_89 = arith.constant 0 : index
    %c0_90 = arith.constant 0 : index
    %97 = vector.load %arg6[%c0_89, %c0_90] : memref<128x64xf32, #tpu.memory_space<vmem>>, vector<128x64xf32>
    %cst_91 = arith.constant dense<0.000000e+00> : vector<16x64xf32>
    %98 = tpu.matmul %96, %97, %cst_91 {dimension_numbers = #tpu.dot_dimension_numbers<[1], [0], [0], [1], [0, 0, 1, 1], [], []>} : vector<16x128xf32>, vector<128x64xf32>, vector<16x64xf32> -> vector<16x64xf32>
    %c0_92 = arith.constant 0 : index
    %c0_93 = arith.constant 0 : index
    %99 = vector.load %arg7[%c0_92, %c0_93] : memref<1x64xf32, #tpu.memory_space<vmem>>, vector<1x64xf32>
    %100 = vector.broadcast %99 : vector<1x64xf32> to vector<16x64xf32>
    %101 = arith.addf %98, %100 : vector<16x64xf32>
    %cst_94 = arith.constant 0.000000e+00 : f32
    %102 = vector.broadcast %cst_94 : f32 to vector<16x64xf32>
    %103 = arith.cmpf ogt, %101, %102 : vector<16x64xf32>
    %cst_95 = arith.constant 0.00999999977 : f32
    %104 = vector.broadcast %cst_95 : f32 to vector<16x64xf32>
    %105 = arith.mulf %104, %101 : vector<16x64xf32>
    %106 = arith.select %103, %101, %105 : vector<16x64xi1>, vector<16x64xf32>
    %c0_96 = arith.constant 0 : index
    %c0_97 = arith.constant 0 : index
    %107 = vector.load %arg8[%c0_96, %c0_97] : memref<64x8xf32, #tpu.memory_space<vmem>>, vector<64x8xf32>
    %cst_98 = arith.constant dense<0.000000e+00> : vector<16x8xf32>
    %108 = tpu.matmul %106, %107, %cst_98 {dimension_numbers = #tpu.dot_dimension_numbers<[1], [0], [0], [1], [0, 0, 1, 1], [], []>} : vector<16x64xf32>, vector<64x8xf32>, vector<16x8xf32> -> vector<16x8xf32>
    %c0_99 = arith.constant 0 : index
    %c0_100 = arith.constant 0 : index
    %109 = vector.load %arg9[%c0_99, %c0_100] : memref<1x8xf32, #tpu.memory_space<vmem>>, vector<1x8xf32>
    %110 = vector.broadcast %109 : vector<1x8xf32> to vector<16x8xf32>
    %111 = arith.addf %108, %110 : vector<16x8xf32>
    %112 = arith.negf %111 : vector<16x8xf32>
    %113 = math.exp %112 : vector<16x8xf32>
    %cst_101 = arith.constant 1.000000e+00 : f32
    %114 = vector.broadcast %cst_101 : f32 to vector<16x8xf32>
    %115 = arith.addf %114, %113 : vector<16x8xf32>
    %116 = arith.divf %114, %115 : vector<16x8xf32>
    %c0_102 = arith.constant 0 : index
    %c0_103 = arith.constant 0 : index
    %c0_104 = arith.constant 0 : index
    %117 = vector.load %arg10[%c0_102, %c0_103, %c0_104] : memref<1x16x8xf32, #tpu.memory_space<vmem>>, vector<1x16x8xf32>
    %118 = vector.shape_cast %117 : vector<1x16x8xf32> to vector<16x8xf32>
    %119 = vector.shape_cast %116 : vector<16x8xf32> to vector<1x16x8xf32>
    tpu.vector_store %arg10[%c0_102, %c0_103, %c0_104], %119 {strides = array<i32>} : memref<1x16x8xf32, #tpu.memory_space<vmem>>, vector<1x16x8xf32>,
    return
  }
  func.func @transform_0(%arg0: i32) -> (i32, i32, i32) {
    %c0_i32 = arith.constant 0 : i32
    %c0_i32_0 = arith.constant 0 : i32
    %c0_i32_1 = arith.constant 0 : i32
    return %arg0, %c0_i32, %c0_i32_0 : i32, i32, i32
  }
  func.func @transform_1(%arg0: i32) -> (i32, i32, i32) {
    %c0_i32 = arith.constant 0 : i32
    %c0_i32_0 = arith.constant 0 : i32
    %c0_i32_1 = arith.constant 0 : i32
    %c0_i32_2 = arith.constant 0 : i32
    return %c0_i32, %c0_i32_0, %c0_i32_1 : i32, i32, i32
  }
  func.func @transform_2(%arg0: i32) -> (i32, i32) {
    %c0_i32 = arith.constant 0 : i32
    %c0_i32_0 = arith.constant 0 : i32
    %c0_i32_1 = arith.constant 0 : i32
    return %c0_i32, %c0_i32_0 : i32, i32
  }
  func.func @transform_3(%arg0: i32) -> (i32, i32, i32) {
    %c0_i32 = arith.constant 0 : i32
    %c0_i32_0 = arith.constant 0 : i32
    %c0_i32_1 = arith.constant 0 : i32
    %c0_i32_2 = arith.constant 0 : i32
    return %c0_i32, %c0_i32_0, %c0_i32_1 : i32, i32, i32
  }
  func.func @transform_4(%arg0: i32) -> (i32, i32) {
    %c0_i32 = arith.constant 0 : i32
    %c0_i32_0 = arith.constant 0 : i32
    %c0_i32_1 = arith.constant 0 : i32
    return %c0_i32, %c0_i32_0 : i32, i32
  }
  func.func @transform_5(%arg0: i32) -> (i32, i32) {
    %c0_i32 = arith.constant 0 : i32
    %c0_i32_0 = arith.constant 0 : i32
    %c0_i32_1 = arith.constant 0 : i32
    return %c0_i32, %c0_i32_0 : i32, i32
  }
  func.func @transform_6(%arg0: i32) -> (i32, i32) {
    %c0_i32 = arith.constant 0 : i32
    %c0_i32_0 = arith.constant 0 : i32
    %c0_i32_1 = arith.constant 0 : i32
    return %c0_i32, %c0_i32_0 : i32, i32
  }
  func.func @transform_7(%arg0: i32) -> (i32, i32) {
    %c0_i32 = arith.constant 0 : i32
    %c0_i32_0 = arith.constant 0 : i32
    %c0_i32_1 = arith.constant 0 : i32
    return %c0_i32, %c0_i32_0 : i32, i32
  }
  func.func @transform_8(%arg0: i32) -> (i32, i32) {
    %c0_i32 = arith.constant 0 : i32
    %c0_i32_0 = arith.constant 0 : i32
    %c0_i32_1 = arith.constant 0 : i32
    return %c0_i32, %c0_i32_0 : i32, i32
  }
  func.func @transform_9(%arg0: i32) -> (i32, i32, i32) {
    %c0_i32 = arith.constant 0 : i32
    %c0_i32_0 = arith.constant 0 : i32
    %c0_i32_1 = arith.constant 0 : i32
    return %arg0, %c0_i32, %c0_i32_0 : i32, i32, i32
  }
}

</mosaic_0001>

<llo_original>
// kernel: tpu_custom_call.1
$region0: #{tpu_custom_call.1}
  #allocation0 [shape = 'u32[]', space=smem, size = 0x4, offset = 0x4, fixed_abs, tag = 'smem constant byte address 0x4 - core index']
  #allocation1 [shape = 'u32[72,128]{1,0:T(1,128)}', space=vmem, size = 0x9000, scoped, tag = 'internal scratch']
  #allocation2 [shape = 'f32[26,38]{1,0:T(8,128)}', space=vmem, size = 0x4000, scoped, tag = 'scratch operand']
  #allocation3 [shape = 'f32[43,64]{1,0:T(8,128)}', space=vmem, size = 0x6000, scoped, tag = 'scratch operand']
  %s0 = inlined_call_operand.vmem [shape: f32[2,16,38], index: 0, kind: input, shape index: {}]
  %s1 = inlined_call_operand.vmem [shape: f32[3,38,64], index: 1, kind: input, shape index: {}]
  %s2 = inlined_call_operand.vmem [shape: f32[1,64], index: 2, kind: input, shape index: {}]
  %s3 = inlined_call_operand.hbm [shape: f32[12,64,128], index: 3, kind: input, shape index: {}]
  %s4 = inlined_call_operand.vmem [shape: f32[1,128], index: 4, kind: input, shape index: {}]
  %s5 = inlined_call_operand.vmem [shape: f32[128,64], index: 5, kind: input, shape index: {}]
  %s6 = inlined_call_operand.vmem [shape: f32[1,64], index: 6, kind: input, shape index: {}]
  %s7 = inlined_call_operand.vmem [shape: f32[64,8], index: 7, kind: input, shape index: {}]
  %s8 = inlined_call_operand.vmem [shape: f32[1,8], index: 8, kind: input, shape index: {}]
  %s9 = inlined_call_operand.vmem [shape: f32[2,16,8], index: 9, kind: output, shape index: {}]
  %s10 = sld [smem:[#allocation0]]
  $region73: #{tpu_custom_call.1} parent=0
    _
  %s12 = ssub.s32 1, %s10
  %s13 = scalar_select 0, %s12, %s10
  $region1: #{tpu_custom_call.1} parent=0
    #allocation4 [shape = 'u8[393216]{0}', space=vmem, size = 0x60000, scoped, tag = 'input window, operand 3, single buffered']
    #allocation5 [shape = 's32[2]{0}', space=sflag, size = 0x8, scoped, tag = 'scoped memory for tpu_custom_call.1']
    %14 = vsyncpa [#allocation5], 0
    loop: start=0, step=1, limit=4
    $region2: #{tpu_custom_call.1} parent=1 // loop_pre_header
      _
    $region3: #{tpu_custom_call.1} parent=1 // loop_header
      %s16 = sphi 0, %s20
      %p17 = scmp.ge.s32.totalorder %s16, 4
      %s26 = sphi 0, %s28
      %s29 = sphi 0, %s26
      %s30 = sphi 0, %s29
      %s46 = sphi 0, %s30
      %s50 = sphi 0, %s50
      %s52 = sphi 0, %s50
      %s53 = sphi 0, %s52
      %s67 = sphi 0, %s53
      %s71 = sphi 0, %s71
      %s73 = sphi 0, %s71
      %s74 = sphi 0, %s73
      %s88 = sphi 0, %s74
      %s92 = sphi 0, %s92
      %s94 = sphi 0, %s92
      %s95 = sphi 0, %s94
      %s109 = sphi 0, %s95
      %s113 = sphi 0, %s113
      %s115 = sphi 0, %s113
      %s116 = sphi 0, %s115
      %s130 = sphi 0, %s116
      %s134 = sphi 0, %s134
      %s136 = sphi 0, %s134
      %s137 = sphi 0, %s136
      %s151 = sphi 0, %s137
      %s155 = sphi 0, %s155
      %s157 = sphi 0, %s155
      %s158 = sphi 0, %s157
      %s172 = sphi 0, %s158
      %s176 = sphi 0, %s176
      %s178 = sphi 0, %s176
      %s179 = sphi 0, %s178
      %s193 = sphi 0, %s179
      %s197 = sphi 0, %s197
      %s199 = sphi 0, %s197
      %s200 = sphi 0, %s199
      %s214 = sphi 0, %s200
      %s220 = sphi 0, %s222
      %s223 = sphi 0, %s220
      %s224 = sphi 0, %s223
      %s240 = sphi 0, %s224
    $region4: #{tpu_custom_call.1} parent=1 // loop_header_branch
      %19 = sbr.rel (%p17) target = $region8
    $region5: #{tpu_custom_call.1} parent=1 // loop_body
      %s21 = ssub.s32 %s16, 1
      %s22 = ssub.s32 %s16, 2
      %s23 = sadd.s32 %s16, 1
      %s24 = ssub.s32 %s16, %s23
      %p25 = scmp.eq.s32.totalorder %s24, 0
      %s27 = sadd.s32 %s26, 1
      %s28 = scalar_select %p25, %s26, %s27
      %p31 = pneg %p25
      %p32 = scmp.eq.s32.totalorder %s16, 1
      %p33 = por %p31, %p32
      %p34 = scmp.ne.s32.totalorder %s26, %s29
      %p35 = scmp.eq.s32.totalorder %s16, 0
      %p36 = por %p34, %p35
      %p37 = scmp.ne.s32.totalorder %s26, %s29
      %p38 = scmp.eq.s32.totalorder %s21, 1
      %p39 = por %p37, %p38
      %p40 = scmp.ne.s32.totalorder %s29, %s30
      %p41 = scmp.eq.s32.totalorder %s21, 0
      %p42 = por %p40, %p41
      %p43 = scmp.ne.s32.totalorder %s29, %s30
      %p44 = scmp.eq.s32.totalorder %s22, 1
      %p45 = por %p43, %p44
      %p47 = scmp.ne.s32.totalorder %s30, %s46
      %p48 = scmp.eq.s32.totalorder %s22, 0
      %p49 = por %p47, %p48
      %s51 = sadd.s32 %s50, 1
      %p54 = scmp.eq.s32.totalorder %s16, 1
      %p55 = scmp.ne.s32.totalorder %s50, %s52
      %p56 = scmp.eq.s32.totalorder %s16, 0
      %p57 = por %p55, %p56
      %p58 = scmp.ne.s32.totalorder %s50, %s52
      %p59 = scmp.eq.s32.totalorder %s21, 1
      %p60 = por %p58, %p59
      %p61 = scmp.ne.s32.totalorder %s52, %s53
      %p62 = scmp.eq.s32.totalorder %s21, 0
      %p63 = por %p61, %p62
      %p64 = scmp.ne.s32.totalorder %s52, %s53
      %p65 = scmp.eq.s32.totalorder %s22, 1
      %p66 = por %p64, %p65
      %p68 = scmp.ne.s32.totalorder %s53, %s67
      %p69 = scmp.eq.s32.totalorder %s22, 0
      %p70 = por %p68, %p69
      %s72 = sadd.s32 %s71, 1
      %p75 = scmp.eq.s32.totalorder %s16, 1
      %p76 = scmp.ne.s32.totalorder %s71, %s73
      %p77 = scmp.eq.s32.totalorder %s16, 0
      %p78 = por %p76, %p77
      %p79 = scmp.ne.s32.totalorder %s71, %s73
      %p80 = scmp.eq.s32.totalorder %s21, 1
      %p81 = por %p79, %p80
      %p82 = scmp.ne.s32.totalorder %s73, %s74
      %p83 = scmp.eq.s32.totalorder %s21, 0
      %p84 = por %p82, %p83
      %p85 = scmp.ne.s32.totalorder %s73, %s74
      %p86 = scmp.eq.s32.totalorder %s22, 1
      %p87 = por %p85, %p86
      %p89 = scmp.ne.s32.totalorder %s74, %s88
      %p90 = scmp.eq.s32.totalorder %s22, 0
      %p91 = por %p89, %p90
      %s93 = sadd.s32 %s92, 1
      %p96 = scmp.eq.s32.totalorder %s16, 1
      %p97 = scmp.ne.s32.totalorder %s92, %s94
      %p98 = scmp.eq.s32.totalorder %s16, 0
      %p99 = por %p97, %p98
      %p100 = scmp.ne.s32.totalorder %s92, %s94
      %p101 = scmp.eq.s32.totalorder %s21, 1
      %p102 = por %p100, %p101
      %p103 = scmp.ne.s32.totalorder %s94, %s95
      %p104 = scmp.eq.s32.totalorder %s21, 0
      %p105 = por %p103, %p104
      %p106 = scmp.ne.s32.totalorder %s94, %s95
      %p107 = scmp.eq.s32.totalorder %s22, 1
      %p108 = por %p106, %p107
      %p110 = scmp.ne.s32.totalorder %s95, %s109
      %p111 = scmp.eq.s32.totalorder %s22, 0
      %p112 = por %p110, %p111
      %s114 = sadd.s32 %s113, 1
      %p117 = scmp.eq.s32.totalorder %s16, 1
      %p118 = scmp.ne.s32.totalorder %s113, %s115
      %p119 = scmp.eq.s32.totalorder %s16, 0
      %p120 = por %p118, %p119
      %p121 = scmp.ne.s32.totalorder %s113, %s115
      %p122 = scmp.eq.s32.totalorder %s21, 1
      %p123 = por %p121, %p122
      %p124 = scmp.ne.s32.totalorder %s115, %s116
      %p125 = scmp.eq.s32.totalorder %s21, 0
      %p126 = por %p124, %p125
      %p127 = scmp.ne.s32.totalorder %s115, %s116
      %p128 = scmp.eq.s32.totalorder %s22, 1
      %p129 = por %p127, %p128
      %p131 = scmp.ne.s32.totalorder %s116, %s130
      %p132 = scmp.eq.s32.totalorder %s22, 0
      %p133 = por %p131, %p132
      %s135 = sadd.s32 %s134, 1
      %p138 = scmp.eq.s32.totalorder %s16, 1
      %p139 = scmp.ne.s32.totalorder %s134, %s136
      %p140 = scmp.eq.s32.totalorder %s16, 0
      %p141 = por %p139, %p140
      %p142 = scmp.ne.s32.totalorder %s134, %s136
      %p143 = scmp.eq.s32.totalorder %s21, 1
      %p144 = por %p142, %p143
      %p145 = scmp.ne.s32.totalorder %s136, %s137
      %p146 = scmp.eq.s32.totalorder %s21, 0
      %p147 = por %p145, %p146
      %p148 = scmp.ne.s32.totalorder %s136, %s137
      %p149 = scmp.eq.s32.totalorder %s22, 1
      %p150 = por %p148, %p149
      %p152 = scmp.ne.s32.totalorder %s137, %s151
      %p153 = scmp.eq.s32.totalorder %s22, 0
      %p154 = por %p152, %p153
      %s156 = sadd.s32 %s155, 1
      %p159 = scmp.eq.s32.totalorder %s16, 1
      %p160 = scmp.ne.s32.totalorder %s155, %s157
      %p161 = scmp.eq.s32.totalorder %s16, 0
      %p162 = por %p160, %p161
      %p163 = scmp.ne.s32.totalorder %s155, %s157
      %p164 = scmp.eq.s32.totalorder %s21, 1
      %p165 = por %p163, %p164
      %p166 = scmp.ne.s32.totalorder %s157, %s158
      %p167 = scmp.eq.s32.totalorder %s21, 0
      %p168 = por %p166, %p167
      %p169 = scmp.ne.s32.totalorder %s157, %s158
      %p170 = scmp.eq.s32.totalorder %s22, 1
      %p171 = por %p169, %p170
      %p173 = scmp.ne.s32.totalorder %s158, %s172
      %p174 = scmp.eq.s32.totalorder %s22, 0
      %p175 = por %p173, %p174
      %s177 = sadd.s32 %s176, 1
      %p180 = scmp.eq.s32.totalorder %s16, 1
      %p181 = scmp.ne.s32.totalorder %s176, %s178
      %p182 = scmp.eq.s32.totalorder %s16, 0
      %p183 = por %p181, %p182
      %p184 = scmp.ne.s32.totalorder %s176, %s178
      %p185 = scmp.eq.s32.totalorder %s21, 1
      %p186 = por %p184, %p185
      %p187 = scmp.ne.s32.totalorder %s178, %s179
      %p188 = scmp.eq.s32.totalorder %s21, 0
      %p189 = por %p187, %p188
      %p190 = scmp.ne.s32.totalorder %s178, %s179
      %p191 = scmp.eq.s32.totalorder %s22, 1
      %p192 = por %p190, %p191
      %p194 = scmp.ne.s32.totalorder %s179, %s193
      %p195 = scmp.eq.s32.totalorder %s22, 0
      %p196 = por %p194, %p195
      %s198 = sadd.s32 %s197, 1
      %p201 = scmp.eq.s32.totalorder %s16, 1
      %p202 = scmp.ne.s32.totalorder %s197, %s199
      %p203 = scmp.eq.s32.totalorder %s16, 0
      %p204 = por %p202, %p203
      %p205 = scmp.ne.s32.totalorder %s197, %s199
      %p206 = scmp.eq.s32.totalorder %s21, 1
      %p207 = por %p205, %p206
      %p208 = scmp.ne.s32.totalorder %s199, %s200
      %p209 = scmp.eq.s32.totalorder %s21, 0
      %p210 = por %p208, %p209
      %p211 = scmp.ne.s32.totalorder %s199, %s200
      %p212 = scmp.eq.s32.totalorder %s22, 1
      %p213 = por %p211, %p212
      %p215 = scmp.ne.s32.totalorder %s200, %s214
      %p216 = scmp.eq.s32.totalorder %s22, 0
      %p217 = por %p215, %p216
      %s218 = ssub.s32 %s16, %s23
      %p219 = scmp.eq.s32.totalorder %s218, 0
      %s221 = sadd.s32 %s220, 1
      %s222 = scalar_select %p219, %s220, %s221
      %p225 = pneg %p219
      %p226 = scmp.eq.s32.totalorder %s16, 1
      %p227 = por %p225, %p226
      %p228 = scmp.ne.s32.totalorder %s220, %s223
      %p229 = scmp.eq.s32.totalorder %s16, 0
      %p230 = por %p228, %p229
      %p231 = scmp.ne.s32.totalorder %s220, %s223
      %p232 = scmp.eq.s32.totalorder %s21, 1
      %p233 = por %p231, %p232
      %p234 = scmp.ne.s32.totalorder %s223, %s224
      %p235 = scmp.eq.s32.totalorder %s21, 0
      %p236 = por %p234, %p235
      %p237 = scmp.ne.s32.totalorder %s223, %s224
      %p238 = scmp.eq.s32.totalorder %s22, 1
      %p239 = por %p237, %p238
      %p241 = scmp.ne.s32.totalorder %s224, %s240
      %p242 = scmp.eq.s32.totalorder %s22, 0
      %p243 = por %p241, %p242
      %p244 = scmp.le.s32.totalorder 1, %s16
      %p245 = scmp.lt.s32.totalorder %s16, 3
      %p246 = pnand %p244, %p245
      %p247 = pneg %p246
      // Predicated region
      $region9: #{tpu_custom_call.1} parent=5 // pred_check
        _
      $region10: #{tpu_custom_call.1} parent=5 // pred_check_branch
        %249 = sbr.rel (%p246) target = $region12
      $region11: #{tpu_custom_call.1} parent=5 // pred_region
        %s250 = ssub.s32 %s16, 1
        // Predicated region
        $region13: #{tpu_custom_call.1} parent=11 // pred_check
          %p251 = pneg %p63
        $region14: #{tpu_custom_call.1} parent=11 // pred_check_branch
          %253 = sbr.rel (%p251) target = $region16
        $region15: #{tpu_custom_call.1} parent=11 // pred_region
          _
        $region16: #{tpu_custom_call.1} parent=11 // pred_fallthru
          _
        // Predicated region
        $region17: #{tpu_custom_call.1} parent=11 // pred_check
          %p254 = pneg %p84
        $region18: #{tpu_custom_call.1} parent=11 // pred_check_branch
          %256 = sbr.rel (%p254) target = $region20
        $region19: #{tpu_custom_call.1} parent=11 // pred_region
          _
        $region20: #{tpu_custom_call.1} parent=11 // pred_fallthru
          _
        // Predicated region
        $region21: #{tpu_custom_call.1} parent=11 // pred_check
          %p257 = pneg %p105
        $region22: #{tpu_custom_call.1} parent=11 // pred_check_branch
          %259 = sbr.rel (%p257) target = $region24
        $region23: #{tpu_custom_call.1} parent=11 // pred_region
          %261 = vsyncadd [#allocation5], 0
          %s262 = sshll.u32 %s3, 4
          %s263 = int_to_ptr.hbm [resolvable:$true] %s262
          %s264 = sshll.u32 [#allocation4], 4
          %s265 = int_to_ptr.vmem [resolvable:$true] %s264
          %270 = dma.hbm_to_vmem [thread:$0]  %s263, 12288, %s265, [#allocation5], 128, 128, 8
        $region24: #{tpu_custom_call.1} parent=11 // pred_fallthru
          _
        // Predicated region
        $region25: #{tpu_custom_call.1} parent=11 // pred_check
          %p271 = pneg %p126
        $region26: #{tpu_custom_call.1} parent=11 // pred_check_branch
          %273 = sbr.rel (%p271) target = $region28
        $region27: #{tpu_custom_call.1} parent=11 // pred_region
          _
        $region28: #{tpu_custom_call.1} parent=11 // pred_fallthru
          _
        // Predicated region
        $region29: #{tpu_custom_call.1} parent=11 // pred_check
          %p274 = pneg %p147
        $region30: #{tpu_custom_call.1} parent=11 // pred_check_branch
          %276 = sbr.rel (%p274) target = $region32
        $region31: #{tpu_custom_call.1} parent=11 // pred_region
          _
        $region32: #{tpu_custom_call.1} parent=11 // pred_fallthru
          _
        // Predicated region
        $region33: #{tpu_custom_call.1} parent=11 // pred_check
          %p277 = pneg %p168
        $region34: #{tpu_custom_call.1} parent=11 // pred_check_branch
          %279 = sbr.rel (%p277) target = $region36
        $region35: #{tpu_custom_call.1} parent=11 // pred_region
          _
        $region36: #{tpu_custom_call.1} parent=11 // pred_fallthru
          _
        // Predicated region
        $region37: #{tpu_custom_call.1} parent=11 // pred_check
          %p280 = pneg %p189
        $region38: #{tpu_custom_call.1} parent=11 // pred_check_branch
          %282 = sbr.rel (%p280) target = $region40
        $region39: #{tpu_custom_call.1} parent=11 // pred_region
          _
        $region40: #{tpu_custom_call.1} parent=11 // pred_fallthru
          _
        // Predicated region
        $region41: #{tpu_custom_call.1} parent=11 // pred_check
          %p283 = pneg %p210
        $region42: #{tpu_custom_call.1} parent=11 // pred_check_branch
          %285 = sbr.rel (%p283) target = $region44
        $region43: #{tpu_custom_call.1} parent=11 // pred_region
          _
        $region44: #{tpu_custom_call.1} parent=11 // pred_fallthru
          _
      $region12: #{tpu_custom_call.1} parent=5 // pred_fallthru
        _
      %p286 = scmp.lt.s32.totalorder %s16, 2
      // Predicated region
      $region45: #{tpu_custom_call.1} parent=5 // pred_check
        %p287 = pneg %p286
      $region46: #{tpu_custom_call.1} parent=5 // pred_check_branch
        %289 = sbr.rel (%p287) target = $region48
      $region47: #{tpu_custom_call.1} parent=5 // pred_region
        // Predicated region
        $region49: #{tpu_custom_call.1} parent=47 // pred_check
          %p290 = pneg %p36
        $region50: #{tpu_custom_call.1} parent=47 // pred_check_branch
          %292 = sbr.rel (%p290) target = $region52
        $region51: #{tpu_custom_call.1} parent=47 // pred_region
          %p293 = scmp.lt.s32.totalorder %s16, 1
          %s294 = scalar_select %p293, %s16, 1
          %s295 = smul.addr %s294, 2
          %s296 = smul.addr %s295, 8
          %s297 = scalar_lea.vmem %s0, %s296
        $region52: #{tpu_custom_call.1} parent=47 // pred_fallthru
          _
      $region48: #{tpu_custom_call.1} parent=5 // pred_fallthru
        _
      %p298 = scmp.le.s32.totalorder 1, %s16
      %p299 = scmp.lt.s32.totalorder %s16, 3
      %p300 = pnand %p298, %p299
      %p301 = pneg %p300
      // Predicated region
      $region53: #{tpu_custom_call.1} parent=5 // pred_check
        _
      $region54: #{tpu_custom_call.1} parent=5 // pred_check_branch
        %303 = sbr.rel (%p300) target = $region56
      $region55: #{tpu_custom_call.1} parent=5 // pred_region
        %s304 = ssub.s32 %s16, 1
        // Predicated region
        $region57: #{tpu_custom_call.1} parent=55 // pred_check
          %p305 = pneg %p105
        $region58: #{tpu_custom_call.1} parent=55 // pred_check_branch
          %307 = sbr.rel (%p305) target = $region60
        $region59: #{tpu_custom_call.1} parent=55 // pred_region
          %309 = dma.done [#allocation5], 12288
        $region60: #{tpu_custom_call.1} parent=55 // pred_fallthru
          _
        %p310 = scmp.lt.s32.totalorder %s21, 1
        %s311 = scalar_select %p310, %s21, 1
        %s312 = smul.addr %s311, 2
        %s313 = smul.addr %s312, 8
        %s314 = scalar_lea.vmem %s0, %s313
        %p315 = pneg %p42
        %p316 = pneg %p39
        %p317 = pneg %p63
        %p318 = pneg %p60
        %p319 = pneg %p84
        %p320 = pneg %p81
        %p321 = pneg %p105
        %p322 = pneg %p102
        %p323 = pneg %p126
        %p324 = pneg %p123
        %p325 = pneg %p147
        %p326 = pneg %p144
        %p327 = pneg %p168
        %p328 = pneg %p165
        %p329 = pneg %p189
        %p330 = pneg %p186
        %p331 = pneg %p210
        %p332 = pneg %p207
        %p333 = pneg %p236
        %p334 = pneg %p233
        %p335 = scmp.lt.s32.totalorder %s21, 1
        %s336 = scalar_select %p335, %s21, 1
        %s337 = smul.addr %s336, 2
        %s338 = smul.addr %s337, 8
        %s339 = scalar_lea.vmem %s9, %s338
        %p340 = scmp.lt.s32.totalorder %s21, 1
        %s341 = scalar_select %p340, %s21, 1
        %s342 = smul.addr %s341, 2
        %s343 = smul.addr %s342, 8
        %s344 = scalar_lea.vmem %s0, %s343
        %p345 = scmp.lt.s32.totalorder %s21, 1
        %s346 = scalar_select %p345, %s21, 1
        %s347 = smul.addr %s346, 2
        %s348 = smul.addr %s347, 8
        %s349 = scalar_lea.vmem %s9, %s348
        %vm350 = vcmask 310272
        %351 = vst.msk [vmem:[#allocation2] sm:$0xff] %vm350, 0.0
        %352 = vst.msk [vmem:[#allocation2 + $0x8] sm:$0xff] %vm350, 0.0
        %353 = vst.msk [vmem:[#allocation2 + $0x10] sm:$0xff] %vm350, 0.0
        %vm354 = vcmask 304128
        %355 = vst.msk [vmem:[#allocation2 + $0x18] sm:$0x3] %vm354, 0.0
        %v356 = vld [vmem:[%s344] sm:$0xff]
        %v357 = vld [vmem:[%s344 + $0x8] sm:$0xff]
        %358 = vst.msk [vmem:[#allocation2 + $0x8] sm:$0xff] %vm350, %v356
        %359 = vst.msk [vmem:[#allocation2 + $0x10] sm:$0xff] %vm350, %v357
        %v360 = vld [vmem:[#allocation2 + $0x6] sm:$0xff]
        %v361 = vld [vmem:[#allocation2 + $0xe] sm:$0xff]
        %v362 = vld [vmem:[%s1] sm:$0xff]
        %v363 = vld [vmem:[%s1 + $0x8] sm:$0xff]
        %v364 = vld [vmem:[%s1 + $0x10] sm:$0xff]
        %v365 = vld [vmem:[%s1 + $0x18] sm:$0xff]
        %v366 = vld [vmem:[%s1 + $0x20] sm:$0x3f]
        %v367 = vld [vmem:[#allocation2 + $0x8] sm:$0xff]
        %v368 = vld [vmem:[#allocation2 + $0x10] sm:$0xff]
        %s369 = scalar_lea.vmem %s1, 40
        %v370 = vld [vmem:[%s369] sm:$0xff]
        %v371 = vld [vmem:[%s369 + $0x8] sm:$0xff]
        %v372 = vld [vmem:[%s369 + $0x10] sm:$0xff]
        %v373 = vld [vmem:[%s369 + $0x18] sm:$0xff]
        %v374 = vld [vmem:[%s369 + $0x20] sm:$0x3f]
        %v376 = vsel %vm350, %v367, 0
        %v379 = vsel %vm350, %v368, 0
        %vm381 = vcmask 1045504
        %v383 = vsel %vm381, %v374, 0
        %385 = vmatpush.msra.mxu0 0.0
        %386 = vmatpush.msra.mxu0 0.0
        %387 = vmatpush.msra.mxu0 0.0
        %388 = vmatpush.msra.mxu0 0.0
        %389 = vmatpush.msra.mxu0 0.0
        %390 = vmatpush.msra.mxu0 0.0
        %391 = vmatpush.msra.mxu0 0.0
        %392 = vmatpush.msra.mxu0 0.0
        %393 = vmatpush.msra.mxu0 0.0
        %394 = vmatpush.msra.mxu0 0.0
        %395 = vmatpush.msra.mxu0 0.0
        %396 = vmatpush.msra.mxu0 %v383
        %397 = vmatpush.msra.mxu0 %v373
        %398 = vmatpush.msra.mxu0 %v372
        %399 = vmatpush.msra.mxu0 %v371
        %400 = vmatpush.msra.mxu0 %v370
        %401 = vmatmul.f32.gmra.mxu0 %v376
        %v402 = vpop.f32.mrf.mxu0
        %v403 = vadd.f32 0.0, %v402
        %404 = vmatmul.f32.gmra.mxu0 %v379
        %v405 = vpop.f32.mrf.mxu0
        %v406 = vadd.f32 0.0, %v405
        %407 = vdwg.mxu0
        %v409 = vsel %vm350, %v360, 0
        %v412 = vsel %vm350, %v361, 0
        %v415 = vsel %vm381, %v366, 0
        %417 = vmatpush.msra.mxu0 0.0
        %418 = vmatpush.msra.mxu0 0.0
        %419 = vmatpush.msra.mxu0 0.0
        %420 = vmatpush.msra.mxu0 0.0
        %421 = vmatpush.msra.mxu0 0.0
        %422 = vmatpush.msra.mxu0 0.0
        %423 = vmatpush.msra.mxu0 0.0
        %424 = vmatpush.msra.mxu0 0.0
        %425 = vmatpush.msra.mxu0 0.0
        %426 = vmatpush.msra.mxu0 0.0
        %427 = vmatpush.msra.mxu0 0.0
        %428 = vmatpush.msra.mxu0 %v415
        %429 = vmatpush.msra.mxu0 %v365
        %430 = vmatpush.msra.mxu0 %v364
        %431 = vmatpush.msra.mxu0 %v363
        %432 = vmatpush.msra.mxu0 %v362
        %433 = vmatmul.f32.gmra.mxu0 %v409
        %v434 = vpop.f32.mrf.mxu0
        %v435 = vadd.f32 %v403, %v434
        %436 = vmatmul.f32.gmra.mxu0 %v412
        %v437 = vpop.f32.mrf.mxu0
        %v438 = vadd.f32 %v406, %v437
        %439 = vdwg.mxu0
        %v440 = vld [vmem:[#allocation2 + $0xa] sm:$0xff]
        %v441 = vld [vmem:[#allocation2 + $0x12] sm:$0xff]
        %s442 = scalar_lea.vmem %s1, 80
        %v443 = vld [vmem:[%s442] sm:$0xff]
        %v444 = vld [vmem:[%s442 + $0x8] sm:$0xff]
        %v445 = vld [vmem:[%s442 + $0x10] sm:$0xff]
        %v446 = vld [vmem:[%s442 + $0x18] sm:$0xff]
        %v447 = vld [vmem:[%s442 + $0x20] sm:$0x3f]
        %v449 = vsel %vm350, %v440, 0
        %v452 = vsel %vm350, %v441, 0
        %v455 = vsel %vm381, %v447, 0
        %457 = vmatpush.msra.mxu0 0.0
        %458 = vmatpush.msra.mxu0 0.0
        %459 = vmatpush.msra.mxu0 0.0
        %460 = vmatpush.msra.mxu0 0.0
        %461 = vmatpush.msra.mxu0 0.0
        %462 = vmatpush.msra.mxu0 0.0
        %463 = vmatpush.msra.mxu0 0.0
        %464 = vmatpush.msra.mxu0 0.0
        %465 = vmatpush.msra.mxu0 0.0
        %466 = vmatpush.msra.mxu0 0.0
        %467 = vmatpush.msra.mxu0 0.0
        %468 = vmatpush.msra.mxu0 %v455
        %469 = vmatpush.msra.mxu0 %v446
        %470 = vmatpush.msra.mxu0 %v445
        %471 = vmatpush.msra.mxu0 %v444
        %472 = vmatpush.msra.mxu0 %v443
        %473 = vmatmul.f32.gmra.mxu0 %v449
        %v474 = vpop.f32.mrf.mxu0
        %v475 = vadd.f32 0.0, %v474
        %476 = vmatmul.f32.gmra.mxu0 %v452
        %v477 = vpop.f32.mrf.mxu0
        %v478 = vadd.f32 0.0, %v477
        %479 = vdwg.mxu0
        %v480 = vadd.f32 %v435, %v475
        %v481 = vadd.f32 %v438, %v478
        %v482 = vld [vmem:[%s2] sm:$0x1]
        %v484 = vperm.slane %v482, 0
        %v486 = vadd.f32 %v480, %v484
        %v487 = vadd.f32 %v481, %v484
        %vm488 = vcmp.gt.f32.partialorder %v486, 0.0
        %vm489 = vcmp.gt.f32.partialorder %v487, 0.0
        %v490 = vmul.f32 %v486, 0.01
        %v491 = vmul.f32 %v487, 0.01
        %v492 = vsel %vm488, %v486, %v490
        %v493 = vsel %vm489, %v487, %v491
        %vm494 = vcmask 523264
        %495 = vst.msk [vmem:[#allocation3] sm:$0xff] %vm494, 0.0
        %496 = vst.msk [vmem:[#allocation3 + $0x8] sm:$0xff] %vm494, 0.0
        %497 = vst.msk [vmem:[#allocation3 + $0x10] sm:$0xff] %vm494, 0.0
        %498 = vst.msk [vmem:[#allocation3 + $0x18] sm:$0xff] %vm494, 0.0
        %499 = vst.msk [vmem:[#allocation3 + $0x20] sm:$0xff] %vm494, 0.0
        %vm500 = vcmask 518144
        %501 = vst.msk [vmem:[#allocation3 + $0x28] sm:$0x7] %vm500, 0.0
        %502 = vst.msk [vmem:[#allocation3 + $0x10] sm:$0xff] %vm494, %v492
        %503 = vst.msk [vmem:[#allocation3 + $0x18] sm:$0xff] %vm494, %v493
        %v504 = vld [vmem:[#allocation3 + $0x5] sm:$0xff]
        %v505 = vld [vmem:[#allocation3 + $0xd] sm:$0xff]
        %v506 = vld [vmem:[#allocation4] sm:$0xff]
        %v507 = vld [vmem:[#allocation4 + $0x8] sm:$0xff]
        %v508 = vld [vmem:[#allocation4 + $0x10] sm:$0xff]
        %v509 = vld [vmem:[#allocation4 + $0x18] sm:$0xff]
        %v510 = vld [vmem:[#allocation4 + $0x20] sm:$0xff]
        %v511 = vld [vmem:[#allocation4 + $0x28] sm:$0xff]
        %v512 = vld [vmem:[#allocation4 + $0x30] sm:$0xff]
        %v513 = vld [vmem:[#allocation4 + $0x38] sm:$0xff]
        %v514 = vld [vmem:[#allocation3 + $0x7] sm:$0xff]
        %v515 = vld [vmem:[#allocation3 + $0xf] sm:$0xff]
        %s516 = scalar_lea.vmem [#allocation4], 64
        %v517 = vld [vmem:[%s516] sm:$0xff]
        %v518 = vld [vmem:[%s516 + $0x8] sm:$0xff]
        %v519 = vld [vmem:[%s516 + $0x10] sm:$0xff]
        %v520 = vld [vmem:[%s516 + $0x18] sm:$0xff]
        %v521 = vld [vmem:[%s516 + $0x20] sm:$0xff]
        %v522 = vld [vmem:[%s516 + $0x28] sm:$0xff]
        %v523 = vld [vmem:[%s516 + $0x30] sm:$0xff]
        %v524 = vld [vmem:[%s516 + $0x38] sm:$0xff]
        %v526 = vsel %vm494, %v514, 0
        %v529 = vsel %vm494, %v515, 0
        %531 = vmatpush.msra.mxu0 0.0
        %532 = vmatpush.msra.mxu0 0.0
        %533 = vmatpush.msra.mxu0 0.0
        %534 = vmatpush.msra.mxu0 0.0
        %535 = vmatpush.msra.mxu0 0.0
        %536 = vmatpush.msra.mxu0 0.0
        %537 = vmatpush.msra.mxu0 0.0
        %538 = vmatpush.msra.mxu0 0.0
        %539 = vmatpush.msra.mxu0 %v524
        %540 = vmatpush.msra.mxu0 %v523
        %541 = vmatpush.msra.mxu0 %v522
        %542 = vmatpush.msra.mxu0 %v521
        %543 = vmatpush.msra.mxu0 %v520
        %544 = vmatpush.msra.mxu0 %v519
        %545 = vmatpush.msra.mxu0 %v518
        %546 = vmatpush.msra.mxu0 %v517
        %547 = vmatmul.f32.gmra.mxu0 %v526
        %v548 = vpop.f32.mrf.mxu0
        %v549 = vadd.f32 0.0, %v548
        %550 = vmatmul.f32.gmra.mxu0 %v529
        %v551 = vpop.f32.mrf.mxu0
        %v552 = vadd.f32 0.0, %v551
        %553 = vdwg.mxu0
        %v555 = vsel %vm494, %v504, 0
        %v558 = vsel %vm494, %v505, 0
        %560 = vmatpush.msra.mxu0 0.0
        %561 = vmatpush.msra.mxu0 0.0
        %562 = vmatpush.msra.mxu0 0.0
        %563 = vmatpush.msra.mxu0 0.0
        %564 = vmatpush.msra.mxu0 0.0
        %565 = vmatpush.msra.mxu0 0.0
        %566 = vmatpush.msra.mxu0 0.0
        %567 = vmatpush.msra.mxu0 0.0
        %568 = vmatpush.msra.mxu0 %v513
        %569 = vmatpush.msra.mxu0 %v512
        %570 = vmatpush.msra.mxu0 %v511
        %571 = vmatpush.msra.mxu0 %v510
        %572 = vmatpush.msra.mxu0 %v509
        %573 = vmatpush.msra.mxu0 %v508
        %574 = vmatpush.msra.mxu0 %v507
        %575 = vmatpush.msra.mxu0 %v506
        %576 = vmatmul.f32.gmra.mxu0 %v555
        %v577 = vpop.f32.mrf.mxu0
        %v578 = vadd.f32 %v549, %v577
        %579 = vmatmul.f32.gmra.mxu0 %v558
        %v580 = vpop.f32.mrf.mxu0
        %v581 = vadd.f32 %v552, %v580
        %582 = vdwg.mxu0
        %v583 = vld [vmem:[#allocation3 + $0x9] sm:$0xff]
        %v584 = vld [vmem:[#allocation3 + $0x11] sm:$0xff]
        %s585 = scalar_lea.vmem [#allocation4], 128
        %v586 = vld [vmem:[%s585] sm:$0xff]
        %v587 = vld [vmem:[%s585 + $0x8] sm:$0xff]
        %v588 = vld [vmem:[%s585 + $0x10] sm:$0xff]
        %v589 = vld [vmem:[%s585 + $0x18] sm:$0xff]
        %v590 = vld [vmem:[%s585 + $0x20] sm:$0xff]
        %v591 = vld [vmem:[%s585 + $0x28] sm:$0xff]
        %v592 = vld [vmem:[%s585 + $0x30] sm:$0xff]
        %v593 = vld [vmem:[%s585 + $0x38] sm:$0xff]
        %v595 = vsel %vm494, %v583, 0
        %v598 = vsel %vm494, %v584, 0
        %600 = vmatpush.msra.mxu0 0.0
        %601 = vmatpush.msra.mxu0 0.0
        %602 = vmatpush.msra.mxu0 0.0
        %603 = vmatpush.msra.mxu0 0.0
        %604 = vmatpush.msra.mxu0 0.0
        %605 = vmatpush.msra.mxu0 0.0
        %606 = vmatpush.msra.mxu0 0.0
        %607 = vmatpush.msra.mxu0 0.0
        %608 = vmatpush.msra.mxu0 %v593
        %609 = vmatpush.msra.mxu0 %v592
        %610 = vmatpush.msra.mxu0 %v591
        %611 = vmatpush.msra.mxu0 %v590
        %612 = vmatpush.msra.mxu0 %v589
        %613 = vmatpush.msra.mxu0 %v588
        %614 = vmatpush.msra.mxu0 %v587
        %615 = vmatpush.msra.mxu0 %v586
        %616 = vmatmul.f32.gmra.mxu0 %v595
        %v617 = vpop.f32.mrf.mxu0
        %v618 = vadd.f32 0.0, %v617
        %619 = vmatmul.f32.gmra.mxu0 %v598
        %v620 = vpop.f32.mrf.mxu0
        %v621 = vadd.f32 0.0, %v620
        %622 = vdwg.mxu0
        %v623 = vadd.f32 %v578, %v618
        %v624 = vadd.f32 %v581, %v621
        %v625 = vld [vmem:[#allocation3 + $0xb] sm:$0xff]
        %v626 = vld [vmem:[#allocation3 + $0x13] sm:$0xff]
        %s627 = scalar_lea.vmem [#allocation4], 192
        %v628 = vld [vmem:[%s627] sm:$0xff]
        %v629 = vld [vmem:[%s627 + $0x8] sm:$0xff]
        %v630 = vld [vmem:[%s627 + $0x10] sm:$0xff]
        %v631 = vld [vmem:[%s627 + $0x18] sm:$0xff]
        %v632 = vld [vmem:[%s627 + $0x20] sm:$0xff]
        %v633 = vld [vmem:[%s627 + $0x28] sm:$0xff]
        %v634 = vld [vmem:[%s627 + $0x30] sm:$0xff]
        %v635 = vld [vmem:[%s627 + $0x38] sm:$0xff]
        %v637 = vsel %vm494, %v625, 0
        %v640 = vsel %vm494, %v626, 0
        %642 = vmatpush.msra.mxu0 0.0
        %643 = vmatpush.msra.mxu0 0.0
        %644 = vmatpush.msra.mxu0 0.0
        %645 = vmatpush.msra.mxu0 0.0
        %646 = vmatpush.msra.mxu0 0.0
        %647 = vmatpush.msra.mxu0 0.0
        %648 = vmatpush.msra.mxu0 0.0
        %649 = vmatpush.msra.mxu0 0.0
        %650 = vmatpush.msra.mxu0 %v635
        %651 = vmatpush.msra.mxu0 %v634
        %652 = vmatpush.msra.mxu0 %v633
        %653 = vmatpush.msra.mxu0 %v632
        %654 = vmatpush.msra.mxu0 %v631
        %655 = vmatpush.msra.mxu0 %v630
        %656 = vmatpush.msra.mxu0 %v629
        %657 = vmatpush.msra.mxu0 %v628
        %658 = vmatmul.f32.gmra.mxu0 %v637
        %v659 = vpop.f32.mrf.mxu0
        %v660 = vadd.f32 0.0, %v659
        %661 = vmatmul.f32.gmra.mxu0 %v640
        %v662 = vpop.f32.mrf.mxu0
        %v663 = vadd.f32 0.0, %v662
        %664 = vdwg.mxu0
        %v665 = vadd.f32 %v623, %v660
        %v666 = vadd.f32 %v624, %v663
        %v667 = vld [vmem:[#allocation3 + $0xd] sm:$0xff]
        %v668 = vld [vmem:[#allocation3 + $0x15] sm:$0xff]
        %s669 = scalar_lea.vmem [#allocation4], 256
        %v670 = vld [vmem:[%s669] sm:$0xff]
        %v671 = vld [vmem:[%s669 + $0x8] sm:$0xff]
        %v672 = vld [vmem:[%s669 + $0x10] sm:$0xff]
        %v673 = vld [vmem:[%s669 + $0x18] sm:$0xff]
        %v674 = vld [vmem:[%s669 + $0x20] sm:$0xff]
        %v675 = vld [vmem:[%s669 + $0x28] sm:$0xff]
        %v676 = vld [vmem:[%s669 + $0x30] sm:$0xff]
        %v677 = vld [vmem:[%s669 + $0x38] sm:$0xff]
        %v679 = vsel %vm494, %v667, 0
        %v682 = vsel %vm494, %v668, 0
        %684 = vmatpush.msra.mxu0 0.0
        %685 = vmatpush.msra.mxu0 0.0
        %686 = vmatpush.msra.mxu0 0.0
        %687 = vmatpush.msra.mxu0 0.0
        %688 = vmatpush.msra.mxu0 0.0
        %689 = vmatpush.msra.mxu0 0.0
        %690 = vmatpush.msra.mxu0 0.0
        %691 = vmatpush.msra.mxu0 0.0
        %692 = vmatpush.msra.mxu0 %v677
        %693 = vmatpush.msra.mxu0 %v676
        %694 = vmatpush.msra.mxu0 %v675
        %695 = vmatpush.msra.mxu0 %v674
        %696 = vmatpush.msra.mxu0 %v673
        %697 = vmatpush.msra.mxu0 %v672
        %698 = vmatpush.msra.mxu0 %v671
        %699 = vmatpush.msra.mxu0 %v670
        %700 = vmatmul.f32.gmra.mxu0 %v679
        %v701 = vpop.f32.mrf.mxu0
        %v702 = vadd.f32 0.0, %v701
        %703 = vmatmul.f32.gmra.mxu0 %v682
        %v704 = vpop.f32.mrf.mxu0
        %v705 = vadd.f32 0.0, %v704
        %706 = vdwg.mxu0
        %v707 = vadd.f32 %v665, %v702
        %v708 = vadd.f32 %v666, %v705
        %v709 = vld [vmem:[#allocation3 + $0xf] sm:$0xff]
        %v710 = vld [vmem:[#allocation3 + $0x17] sm:$0xff]
        %s711 = scalar_lea.vmem [#allocation4], 320
        %v712 = vld [vmem:[%s711] sm:$0xff]
        %v713 = vld [vmem:[%s711 + $0x8] sm:$0xff]
        %v714 = vld [vmem:[%s711 + $0x10] sm:$0xff]
        %v715 = vld [vmem:[%s711 + $0x18] sm:$0xff]
        %v716 = vld [vmem:[%s711 + $0x20] sm:$0xff]
        %v717 = vld [vmem:[%s711 + $0x28] sm:$0xff]
        %v718 = vld [vmem:[%s711 + $0x30] sm:$0xff]
        %v719 = vld [vmem:[%s711 + $0x38] sm:$0xff]
        %v721 = vsel %vm494, %v709, 0
        %v724 = vsel %vm494, %v710, 0
        %726 = vmatpush.msra.mxu0 0.0
        %727 = vmatpush.msra.mxu0 0.0
        %728 = vmatpush.msra.mxu0 0.0
        %729 = vmatpush.msra.mxu0 0.0
        %730 = vmatpush.msra.mxu0 0.0
        %731 = vmatpush.msra.mxu0 0.0
        %732 = vmatpush.msra.mxu0 0.0
        %733 = vmatpush.msra.mxu0 0.0
        %734 = vmatpush.msra.mxu0 %v719
        %735 = vmatpush.msra.mxu0 %v718
        %736 = vmatpush.msra.mxu0 %v717
        %737 = vmatpush.msra.mxu0 %v716
        %738 = vmatpush.msra.mxu0 %v715
        %739 = vmatpush.msra.mxu0 %v714
        %740 = vmatpush.msra.mxu0 %v713
        %741 = vmatpush.msra.mxu0 %v712
        %742 = vmatmul.f32.gmra.mxu0 %v721
        %v743 = vpop.f32.mrf.mxu0
        %v744 = vadd.f32 0.0, %v743
        %745 = vmatmul.f32.gmra.mxu0 %v724
        %v746 = vpop.f32.mrf.mxu0
        %v747 = vadd.f32 0.0, %v746
        %748 = vdwg.mxu0
        %v749 = vadd.f32 %v707, %v744
        %v750 = vadd.f32 %v708, %v747
        %v751 = vld [vmem:[#allocation3 + $0x11] sm:$0xff]
        %v752 = vld [vmem:[#allocation3 + $0x19] sm:$0xff]
        %s753 = scalar_lea.vmem [#allocation4], 384
        %v754 = vld [vmem:[%s753] sm:$0xff]
        %v755 = vld [vmem:[%s753 + $0x8] sm:$0xff]
        %v756 = vld [vmem:[%s753 + $0x10] sm:$0xff]
        %v757 = vld [vmem:[%s753 + $0x18] sm:$0xff]
        %v758 = vld [vmem:[%s753 + $0x20] sm:$0xff]
        %v759 = vld [vmem:[%s753 + $0x28] sm:$0xff]
        %v760 = vld [vmem:[%s753 + $0x30] sm:$0xff]
        %v761 = vld [vmem:[%s753 + $0x38] sm:$0xff]
        %v763 = vsel %vm494, %v751, 0
        %v766 = vsel %vm494, %v752, 0
        %768 = vmatpush.msra.mxu0 0.0
        %769 = vmatpush.msra.mxu0 0.0
        %770 = vmatpush.msra.mxu0 0.0
        %771 = vmatpush.msra.mxu0 0.0
        %772 = vmatpush.msra.mxu0 0.0
        %773 = vmatpush.msra.mxu0 0.0
        %774 = vmatpush.msra.mxu0 0.0
        %775 = vmatpush.msra.mxu0 0.0
        %776 = vmatpush.msra.mxu0 %v761
        %777 = vmatpush.msra.mxu0 %v760
        %778 = vmatpush.msra.mxu0 %v759
        %779 = vmatpush.msra.mxu0 %v758
        %780 = vmatpush.msra.mxu0 %v757
        %781 = vmatpush.msra.mxu0 %v756
        %782 = vmatpush.msra.mxu0 %v755
        %783 = vmatpush.msra.mxu0 %v754
        %784 = vmatmul.f32.gmra.mxu0 %v763
        %v785 = vpop.f32.mrf.mxu0
        %v786 = vadd.f32 0.0, %v785
        %787 = vmatmul.f32.gmra.mxu0 %v766
        %v788 = vpop.f32.mrf.mxu0
        %v789 = vadd.f32 0.0, %v788
        %790 = vdwg.mxu0
        %v791 = vadd.f32 %v749, %v786
        %v792 = vadd.f32 %v750, %v789
        %v793 = vld [vmem:[#allocation3 + $0x13] sm:$0xff]
        %v794 = vld [vmem:[#allocation3 + $0x1b] sm:$0xff]
        %s795 = scalar_lea.vmem [#allocation4], 448
        %v796 = vld [vmem:[%s795] sm:$0xff]
        %v797 = vld [vmem:[%s795 + $0x8] sm:$0xff]
        %v798 = vld [vmem:[%s795 + $0x10] sm:$0xff]
        %v799 = vld [vmem:[%s795 + $0x18] sm:$0xff]
        %v800 = vld [vmem:[%s795 + $0x20] sm:$0xff]
        %v801 = vld [vmem:[%s795 + $0x28] sm:$0xff]
        %v802 = vld [vmem:[%s795 + $0x30] sm:$0xff]
        %v803 = vld [vmem:[%s795 + $0x38] sm:$0xff]
        %v805 = vsel %vm494, %v793, 0
        %v808 = vsel %vm494, %v794, 0
        %810 = vmatpush.msra.mxu0 0.0
        %811 = vmatpush.msra.mxu0 0.0
        %812 = vmatpush.msra.mxu0 0.0
        %813 = vmatpush.msra.mxu0 0.0
        %814 = vmatpush.msra.mxu0 0.0
        %815 = vmatpush.msra.mxu0 0.0
        %816 = vmatpush.msra.mxu0 0.0
        %817 = vmatpush.msra.mxu0 0.0
        %818 = vmatpush.msra.mxu0 %v803
        %819 = vmatpush.msra.mxu0 %v802
        %820 = vmatpush.msra.mxu0 %v801
        %821 = vmatpush.msra.mxu0 %v800
        %822 = vmatpush.msra.mxu0 %v799
        %823 = vmatpush.msra.mxu0 %v798
        %824 = vmatpush.msra.mxu0 %v797
        %825 = vmatpush.msra.mxu0 %v796
        %826 = vmatmul.f32.gmra.mxu0 %v805
        %v827 = vpop.f32.mrf.mxu0
        %v828 = vadd.f32 0.0, %v827
        %829 = vmatmul.f32.gmra.mxu0 %v808
        %v830 = vpop.f32.mrf.mxu0
        %v831 = vadd.f32 0.0, %v830
        %832 = vdwg.mxu0
        %v833 = vadd.f32 %v791, %v828
        %v834 = vadd.f32 %v792, %v831
        %v835 = vld [vmem:[#allocation3 + $0x15] sm:$0xff]
        %v836 = vld [vmem:[#allocation3 + $0x1d] sm:$0xff]
        %s837 = scalar_lea.vmem [#allocation4], 512
        %v838 = vld [vmem:[%s837] sm:$0xff]
        %v839 = vld [vmem:[%s837 + $0x8] sm:$0xff]
        %v840 = vld [vmem:[%s837 + $0x10] sm:$0xff]
        %v841 = vld [vmem:[%s837 + $0x18] sm:$0xff]
        %v842 = vld [vmem:[%s837 + $0x20] sm:$0xff]
        %v843 = vld [vmem:[%s837 + $0x28] sm:$0xff]
        %v844 = vld [vmem:[%s837 + $0x30] sm:$0xff]
        %v845 = vld [vmem:[%s837 + $0x38] sm:$0xff]
        %v847 = vsel %vm494, %v835, 0
        %v850 = vsel %vm494, %v836, 0
        %852 = vmatpush.msra.mxu0 0.0
        %853 = vmatpush.msra.mxu0 0.0
        %854 = vmatpush.msra.mxu0 0.0
        %855 = vmatpush.msra.mxu0 0.0
        %856 = vmatpush.msra.mxu0 0.0
        %857 = vmatpush.msra.mxu0 0.0
        %858 = vmatpush.msra.mxu0 0.0
        %859 = vmatpush.msra.mxu0 0.0
        %860 = vmatpush.msra.mxu0 %v845
        %861 = vmatpush.msra.mxu0 %v844
        %862 = vmatpush.msra.mxu0 %v843
        %863 = vmatpush.msra.mxu0 %v842
        %864 = vmatpush.msra.mxu0 %v841
        %865 = vmatpush.msra.mxu0 %v840
        %866 = vmatpush.msra.mxu0 %v839
        %867 = vmatpush.msra.mxu0 %v838
        %868 = vmatmul.f32.gmra.mxu0 %v847
        %v869 = vpop.f32.mrf.mxu0
        %v870 = vadd.f32 0.0, %v869
        %871 = vmatmul.f32.gmra.mxu0 %v850
        %v872 = vpop.f32.mrf.mxu0
        %v873 = vadd.f32 0.0, %v872
        %874 = vdwg.mxu0
        %v875 = vadd.f32 %v833, %v870
        %v876 = vadd.f32 %v834, %v873
        %v877 = vld [vmem:[#allocation3 + $0x17] sm:$0xff]
        %v878 = vld [vmem:[#allocation3 + $0x1f] sm:$0xff]
        %s879 = scalar_lea.vmem [#allocation4], 576
        %v880 = vld [vmem:[%s879] sm:$0xff]
        %v881 = vld [vmem:[%s879 + $0x8] sm:$0xff]
        %v882 = vld [vmem:[%s879 + $0x10] sm:$0xff]
        %v883 = vld [vmem:[%s879 + $0x18] sm:$0xff]
        %v884 = vld [vmem:[%s879 + $0x20] sm:$0xff]
        %v885 = vld [vmem:[%s879 + $0x28] sm:$0xff]
        %v886 = vld [vmem:[%s879 + $0x30] sm:$0xff]
        %v887 = vld [vmem:[%s879 + $0x38] sm:$0xff]
        %v889 = vsel %vm494, %v877, 0
        %v892 = vsel %vm494, %v878, 0
        %894 = vmatpush.msra.mxu0 0.0
        %895 = vmatpush.msra.mxu0 0.0
        %896 = vmatpush.msra.mxu0 0.0
        %897 = vmatpush.msra.mxu0 0.0
        %898 = vmatpush.msra.mxu0 0.0
        %899 = vmatpush.msra.mxu0 0.0
        %900 = vmatpush.msra.mxu0 0.0
        %901 = vmatpush.msra.mxu0 0.0
        %902 = vmatpush.msra.mxu0 %v887
        %903 = vmatpush.msra.mxu0 %v886
        %904 = vmatpush.msra.mxu0 %v885
        %905 = vmatpush.msra.mxu0 %v884
        %906 = vmatpush.msra.mxu0 %v883
        %907 = vmatpush.msra.mxu0 %v882
        %908 = vmatpush.msra.mxu0 %v881
        %909 = vmatpush.msra.mxu0 %v880
        %910 = vmatmul.f32.gmra.mxu0 %v889
        %v911 = vpop.f32.mrf.mxu0
        %v912 = vadd.f32 0.0, %v911
        %913 = vmatmul.f32.gmra.mxu0 %v892
        %v914 = vpop.f32.mrf.mxu0
        %v915 = vadd.f32 0.0, %v914
        %916 = vdwg.mxu0
        %v917 = vadd.f32 %v875, %v912
        %v918 = vadd.f32 %v876, %v915
        %v919 = vld [vmem:[#allocation3 + $0x19] sm:$0xff]
        %v920 = vld [vmem:[#allocation3 + $0x21] sm:$0xff]
        %s921 = scalar_lea.vmem [#allocation4], 640
        %v922 = vld [vmem:[%s921] sm:$0xff]
        %v923 = vld [vmem:[%s921 + $0x8] sm:$0xff]
        %v924 = vld [vmem:[%s921 + $0x10] sm:$0xff]
        %v925 = vld [vmem:[%s921 + $0x18] sm:$0xff]
        %v926 = vld [vmem:[%s921 + $0x20] sm:$0xff]
        %v927 = vld [vmem:[%s921 + $0x28] sm:$0xff]
        %v928 = vld [vmem:[%s921 + $0x30] sm:$0xff]
        %v929 = vld [vmem:[%s921 + $0x38] sm:$0xff]
        %v931 = vsel %vm494, %v919, 0
        %v934 = vsel %vm494, %v920, 0
        %936 = vmatpush.msra.mxu0 0.0
        %937 = vmatpush.msra.mxu0 0.0
        %938 = vmatpush.msra.mxu0 0.0
        %939 = vmatpush.msra.mxu0 0.0
        %940 = vmatpush.msra.mxu0 0.0
        %941 = vmatpush.msra.mxu0 0.0
        %942 = vmatpush.msra.mxu0 0.0
        %943 = vmatpush.msra.mxu0 0.0
        %944 = vmatpush.msra.mxu0 %v929
        %945 = vmatpush.msra.mxu0 %v928
        %946 = vmatpush.msra.mxu0 %v927
        %947 = vmatpush.msra.mxu0 %v926
        %948 = vmatpush.msra.mxu0 %v925
        %949 = vmatpush.msra.mxu0 %v924
        %950 = vmatpush.msra.mxu0 %v923
        %951 = vmatpush.msra.mxu0 %v922
        %952 = vmatmul.f32.gmra.mxu0 %v931
        %v953 = vpop.f32.mrf.mxu0
        %v954 = vadd.f32 0.0, %v953
        %955 = vmatmul.f32.gmra.mxu0 %v934
        %v956 = vpop.f32.mrf.mxu0
        %v957 = vadd.f32 0.0, %v956
        %958 = vdwg.mxu0
        %v959 = vadd.f32 %v917, %v954
        %v960 = vadd.f32 %v918, %v957
        %v961 = vld [vmem:[#allocation3 + $0x1b] sm:$0xff]
        %v962 = vld [vmem:[#allocation3 + $0x23] sm:$0xff]
        %s963 = scalar_lea.vmem [#allocation4], 704
        %v964 = vld [vmem:[%s963] sm:$0xff]
        %v965 = vld [vmem:[%s963 + $0x8] sm:$0xff]
        %v966 = vld [vmem:[%s963 + $0x10] sm:$0xff]
        %v967 = vld [vmem:[%s963 + $0x18] sm:$0xff]
        %v968 = vld [vmem:[%s963 + $0x20] sm:$0xff]
        %v969 = vld [vmem:[%s963 + $0x28] sm:$0xff]
        %v970 = vld [vmem:[%s963 + $0x30] sm:$0xff]
        %v971 = vld [vmem:[%s963 + $0x38] sm:$0xff]
        %v973 = vsel %vm494, %v961, 0
        %v976 = vsel %vm494, %v962, 0
        %978 = vmatpush.msra.mxu0 0.0
        %979 = vmatpush.msra.mxu0 0.0
        %980 = vmatpush.msra.mxu0 0.0
        %981 = vmatpush.msra.mxu0 0.0
        %982 = vmatpush.msra.mxu0 0.0
        %983 = vmatpush.msra.mxu0 0.0
        %984 = vmatpush.msra.mxu0 0.0
        %985 = vmatpush.msra.mxu0 0.0
        %986 = vmatpush.msra.mxu0 %v971
        %987 = vmatpush.msra.mxu0 %v970
        %988 = vmatpush.msra.mxu0 %v969
        %989 = vmatpush.msra.mxu0 %v968
        %990 = vmatpush.msra.mxu0 %v967
        %991 = vmatpush.msra.mxu0 %v966
        %992 = vmatpush.msra.mxu0 %v965
        %993 = vmatpush.msra.mxu0 %v964
        %994 = vmatmul.f32.gmra.mxu0 %v973
        %v995 = vpop.f32.mrf.mxu0
        %v996 = vadd.f32 0.0, %v995
        %997 = vmatmul.f32.gmra.mxu0 %v976
        %v998 = vpop.f32.mrf.mxu0
        %v999 = vadd.f32 0.0, %v998
        %1000 = vdwg.mxu0
        %v1001 = vadd.f32 %v959, %v996
        %v1002 = vadd.f32 %v960, %v999
        %v1003 = vld [vmem:[%s4] sm:$0x1]
        %v1005 = vperm.slane %v1003, 0
        %v1007 = vadd.f32 %v1001, %v1005
        %v1008 = vadd.f32 %v1002, %v1005
        %vm1009 = vcmp.gt.f32.partialorder %v1007, 0.0
        %vm1010 = vcmp.gt.f32.partialorder %v1008, 0.0
        %v1011 = vmul.f32 %v1007, 0.01
        %v1012 = vmul.f32 %v1008, 0.01
        %v1013 = vsel %vm1009, %v1007, %v1011
        %v1014 = vsel %vm1010, %v1008, %v1012
        %v1015 = vld [vmem:[%s5] sm:$0xff]
        %v1016 = vld [vmem:[%s5 + $0x8] sm:$0xff]
        %v1017 = vld [vmem:[%s5 + $0x10] sm:$0xff]
        %v1018 = vld [vmem:[%s5 + $0x18] sm:$0xff]
        %v1019 = vld [vmem:[%s5 + $0x20] sm:$0xff]
        %v1020 = vld [vmem:[%s5 + $0x28] sm:$0xff]
        %v1021 = vld [vmem:[%s5 + $0x30] sm:$0xff]
        %v1022 = vld [vmem:[%s5 + $0x38] sm:$0xff]
        %v1023 = vld [vmem:[%s5 + $0x40] sm:$0xff]
        %v1024 = vld [vmem:[%s5 + $0x48] sm:$0xff]
        %v1025 = vld [vmem:[%s5 + $0x50] sm:$0xff]
        %v1026 = vld [vmem:[%s5 + $0x58] sm:$0xff]
        %v1027 = vld [vmem:[%s5 + $0x60] sm:$0xff]
        %v1028 = vld [vmem:[%s5 + $0x68] sm:$0xff]
        %v1029 = vld [vmem:[%s5 + $0x70] sm:$0xff]
        %v1030 = vld [vmem:[%s5 + $0x78] sm:$0xff]
        %v1031 = vld [vmem:[%s6] sm:$0x1]
        %v1033 = vperm.slane %v1031, 0
        %1035 = vmatpush.msra.mxu0 %v1030
        %1036 = vmatpush.msra.mxu0 %v1029
        %1037 = vmatpush.msra.mxu0 %v1028
        %1038 = vmatpush.msra.mxu0 %v1027
        %1039 = vmatpush.msra.mxu0 %v1026
        %1040 = vmatpush.msra.mxu0 %v1025
        %1041 = vmatpush.msra.mxu0 %v1024
        %1042 = vmatpush.msra.mxu0 %v1023
        %1043 = vmatpush.msra.mxu0 %v1022
        %1044 = vmatpush.msra.mxu0 %v1021
        %1045 = vmatpush.msra.mxu0 %v1020
        %1046 = vmatpush.msra.mxu0 %v1019
        %1047 = vmatpush.msra.mxu0 %v1018
        %1048 = vmatpush.msra.mxu0 %v1017
        %1049 = vmatpush.msra.mxu0 %v1016
        %1050 = vmatpush.msra.mxu0 %v1015
        %1051 = vmatmul.f32.gmra.mxu0 %v1013
        %v1052 = vpop.f32.mrf.mxu0
        %v1053 = vadd.f32 %v1033, %v1052
        %1054 = vmatmul.f32.gmra.mxu0 %v1014
        %v1055 = vpop.f32.mrf.mxu0
        %v1056 = vadd.f32 %v1033, %v1055
        %1057 = vdwg.mxu0
        %vm1058 = vcmp.gt.f32.partialorder %v1053, 0.0
        %vm1059 = vcmp.gt.f32.partialorder %v1056, 0.0
        %v1060 = vmul.f32 %v1053, 0.01
        %v1061 = vmul.f32 %v1056, 0.01
        %v1062 = vsel %vm1058, %v1053, %v1060
        %v1063 = vsel %vm1059, %v1056, %v1061
        %v1064 = vld [vmem:[%s7] sm:$0xff]
        %v1065 = vld [vmem:[%s7 + $0x8] sm:$0xff]
        %v1066 = vld [vmem:[%s7 + $0x10] sm:$0xff]
        %v1067 = vld [vmem:[%s7 + $0x18] sm:$0xff]
        %v1068 = vld [vmem:[%s7 + $0x20] sm:$0xff]
        %v1069 = vld [vmem:[%s7 + $0x28] sm:$0xff]
        %v1070 = vld [vmem:[%s7 + $0x30] sm:$0xff]
        %v1071 = vld [vmem:[%s7 + $0x38] sm:$0xff]
        %v1072 = vld [vmem:[%s8] sm:$0x1]
        %v1074 = vperm.slane %v1072, 0
        %v1077 = vsel %vm494, %v1062, 0
        %v1080 = vsel %vm494, %v1063, 0
        %1082 = vmatpush.msra.mxu0 0.0
        %1083 = vmatpush.msra.mxu0 0.0
        %1084 = vmatpush.msra.mxu0 0.0
        %1085 = vmatpush.msra.mxu0 0.0
        %1086 = vmatpush.msra.mxu0 0.0
        %1087 = vmatpush.msra.mxu0 0.0
        %1088 = vmatpush.msra.mxu0 0.0
        %1089 = vmatpush.msra.mxu0 0.0
        %1090 = vmatpush.msra.mxu0 %v1071
        %1091 = vmatpush.msra.mxu0 %v1070
        %1092 = vmatpush.msra.mxu0 %v1069
        %1093 = vmatpush.msra.mxu0 %v1068
        %1094 = vmatpush.msra.mxu0 %v1067
        %1095 = vmatpush.msra.mxu0 %v1066
        %1096 = vmatpush.msra.mxu0 %v1065
        %1097 = vmatpush.msra.mxu0 %v1064
        %1098 = vmatmul.f32.gmra.mxu0 %v1077
        %v1099 = vpop.f32.mrf.mxu0
        %v1100 = vadd.f32 %v1074, %v1099
        %1101 = vmatmul.f32.gmra.mxu0 %v1080
        %v1102 = vpop.f32.mrf.mxu0
        %v1103 = vadd.f32 %v1074, %v1102
        %1104 = vdwg.mxu0
        %v1105 = vxor.u32 %v1100, 2147483648
        %v1106 = vxor.u32 %v1103, 2147483648
        %v1107 = vmul.f32 %v1105, 1.442695
        %v1108 = vpow.pop %v1107
        %v1109 = vmul.f32 %v1106, 1.442695
        %v1110 = vpow.pop %v1109
        %v1111 = vadd.f32 %v1108, 1.0
        %v1112 = vadd.f32 %v1110, 1.0
        %v1113 = vrcp.pop %v1111
        %v1114 = vmul.f32 %v1111, %v1113
        %v1115 = vsub.f32 1.0, %v1114
        %v1116 = vmul.f32 %v1113, %v1115
        %v1117 = vadd.f32 %v1113, %v1116
        %vm1118 = vweird.f32 %v1111
        %vm1119 = vweird.f32 %v1113
        %vm1120 = vmor %vm1118, %vm1119
        %v1121 = vsel %vm1120, %v1113, %v1117
        %v1122 = vand.u32 2147483647, %v1111
        %vm1123 = vcmp.eq.f32.partialorder %v1122, 8.507059e+37
        %v1124 = vand.u32 %v1111, 2147483648
        %v1125 = vor.u32 1.1754944e-38, %v1124
        %v1126 = vsel %vm1123, %v1125, %v1121
        %v1127 = vmul.f32 1.0, %v1126
        %v1128 = vrcp.pop %v1112
        %v1129 = vmul.f32 %v1112, %v1128
        %v1130 = vsub.f32 1.0, %v1129
        %v1131 = vmul.f32 %v1128, %v1130
        %v1132 = vadd.f32 %v1128, %v1131
        %vm1133 = vweird.f32 %v1112
        %vm1134 = vweird.f32 %v1128
        %vm1135 = vmor %vm1133, %vm1134
        %v1136 = vsel %vm1135, %v1128, %v1132
        %v1137 = vand.u32 2147483647, %v1112
        %vm1138 = vcmp.eq.f32.partialorder %v1137, 8.507059e+37
        %v1139 = vand.u32 %v1112, 2147483648
        %v1140 = vor.u32 1.1754944e-38, %v1139
        %v1141 = vsel %vm1138, %v1140, %v1136
        %v1142 = vmul.f32 1.0, %v1141
        %vm1143 = vcmask 64512
        %1144 = vst.msk [vmem:[%s349] sm:$0xff] %vm1143, %v1127
        %1145 = vst.msk [vmem:[%s349 + $0x8] sm:$0xff] %vm1143, %v1142
        %p1146 = scmp.lt.s32.totalorder %s21, 1
        %s1147 = scalar_select %p1146, %s21, 1
        %s1148 = smul.addr %s1147, 2
        %s1149 = smul.addr %s1148, 8
        %s1150 = scalar_lea.vmem %s9, %s1149
        // Predicated region
        $region61: #{tpu_custom_call.1} parent=55 // pred_check
          %p1151 = pneg %p233
        $region62: #{tpu_custom_call.1} parent=55 // pred_check_branch
          %1153 = sbr.rel (%p1151) target = $region64
        $region63: #{tpu_custom_call.1} parent=55 // pred_region
          _
        $region64: #{tpu_custom_call.1} parent=55 // pred_fallthru
          _
      $region56: #{tpu_custom_call.1} parent=5 // pred_fallthru
        _
      %p1154 = scmp.le.s32.totalorder 2, %s16
      // Predicated region
      $region65: #{tpu_custom_call.1} parent=5 // pred_check
        %p1155 = pneg %p1154
      $region66: #{tpu_custom_call.1} parent=5 // pred_check_branch
        %1157 = sbr.rel (%p1155) target = $region68
      $region67: #{tpu_custom_call.1} parent=5 // pred_region
        %s1158 = ssub.s32 %s16, 2
        // Predicated region
        $region69: #{tpu_custom_call.1} parent=67 // pred_check
          %p1159 = pneg %p239
        $region70: #{tpu_custom_call.1} parent=67 // pred_check_branch
          %1161 = sbr.rel (%p1159) target = $region72
        $region71: #{tpu_custom_call.1} parent=67 // pred_region
          %p1162 = scmp.lt.s32.totalorder %s22, 1
          %s1163 = scalar_select %p1162, %s22, 1
          %s1164 = smul.addr %s1163, 2
          %s1165 = smul.addr %s1164, 8
          %s1166 = scalar_lea.vmem %s9, %s1165
        $region72: #{tpu_custom_call.1} parent=67 // pred_fallthru
          _
      $region68: #{tpu_custom_call.1} parent=5 // pred_fallthru
        _
    $region6: #{tpu_custom_call.1} parent=1 // loop_footer
      %s20 = sadd.s32 1, %s16
    $region7: #{tpu_custom_call.1} parent=1 // loop_footer_branch
      %15 = sbr.rel target = $region3
    $region8: #{tpu_custom_call.1} parent=1 // loop_exit
      _
    %1167 = vsyncpa [#allocation5], 1
    %s1168 = scalar_lea.sflag [#allocation5], 1
    %1169 = vsyncpa %s1168, 1

</llo_original>
